<compile_context>
chip_gen: v5e
topology: v5e:2x2
jax: 0.10.0
libtpu: 0.0.40
codegen_flags: <defaults>
</compile_context>

<pallas_src>
import functools

import jax
import jax.numpy as jnp
from jax.experimental import pallas as pl
from jax.experimental.pallas import tpu as pltpu


def _round_up(x, m):
    return (x + m - 1) // m * m


def _postnet_fused_kernel(x_ref, *refs, n_layers, K, tile_t, halo, seq_len):
    """Fused Postnet forward for one (batch, time-tile) grid cell.

    x_ref : (1, 1, tile_t + 2*halo, Cin_p0)  bf16 halo'd input window
    refs  : per layer l: w (K*Cin_p, Cout_p) bf16, scale (1,Cout_p) f32,
            shift (1,Cout_p) f32; last ref is o_ref (1, tile_t, Cout_p_last).
    """
    o_ref = refs[-1]
    layer_refs = refs[:-1]
    pad = (K - 1) // 2
    tile_start = pl.program_id(1) * tile_t

    h = x_ref[0, 0]                       # (W, Cin_p0) bf16
    W = tile_t + 2 * halo
    for l in range(n_layers):
        w_ref = layer_refs[3 * l]
        sc_ref = layer_refs[3 * l + 1]
        sh_ref = layer_refs[3 * l + 2]
        w_out = W - (K - 1)
        # im2col: one deep-contraction MXU matmul instead of K shallow taps.
        lhs = jnp.concatenate([h[k:k + w_out, :] for k in range(K)], axis=1)
        acc = jnp.dot(lhs, w_ref[...], preferred_element_type=jnp.float32)
        y = acc * sc_ref[...] + sh_ref[...]          # folded conv-bias + BN (f32)
        if l < n_layers - 1:
            y = jnp.tanh(y)
            # Rows outside [0, seq_len) are the next layer's zero padding.
            start = tile_start - halo + (l + 1) * pad
            pos = start + jax.lax.broadcasted_iota(jnp.int32, (w_out, 1), 0)
            y = jnp.where((pos >= 0) & (pos < seq_len), y, 0.0)
            h = y.astype(jnp.bfloat16)               # bf16 operands for next MXU dot
        else:
            h = y
        W = w_out
    o_ref[0] = h.astype(o_ref.dtype)


def postnet_forward(x_ncl, params, *, tile_t=256):
    """Eval-mode Postnet forward.  x_ncl: (B, n_mel, T) f32 (PyTorch NCL layout)."""
    B, C0, T = x_ncl.shape
    n_layers = len(params)
    K = params[0]["w"].shape[0]
    pad = (K - 1) // 2
    halo = n_layers * pad

    dims = [params[0]["w"].shape[1]] + [p["w"].shape[2] for p in params]
    dims_p = [_round_up(d, 128) for d in dims]          # lane-dense channels

    tile_t = min(_round_up(T, 8), tile_t)
    T_pad = _round_up(T, tile_t)
    n_tiles = T_pad // tile_t
    W = tile_t + 2 * halo

    # Channel-last, channel-padded, time-halo-padded input; overlapped halo'd
    # windows per time tile (only the small input is re-laid-out in HBM).
    x = jnp.transpose(x_ncl, (0, 2, 1))                               # (B, T, C0)
    x = jnp.pad(x, ((0, 0), (halo, halo + T_pad - T), (0, dims_p[0] - C0)))
    win_idx = jnp.arange(n_tiles)[:, None] * tile_t + jnp.arange(W)[None, :]
    x_win = jnp.take(x, win_idx, axis=1).astype(jnp.bfloat16)         # (B, nt, W, Cp0)

    args = [x_win]
    in_specs = [pl.BlockSpec((1, 1, W, dims_p[0]), lambda b, t: (b, t, 0, 0))]
    flops = 0
    trans = 0
    bytes_acc = x_win.size * 2
    for l, p in enumerate(params):
        cin, cout = dims[l], dims[l + 1]
        cin_p, cout_p = dims_p[l], dims_p[l + 1]
        w = jnp.zeros((K, cin_p, cout_p), jnp.float32).at[:, :cin, :cout].set(p["w"])
        w = w.reshape(K * cin_p, cout_p).astype(jnp.bfloat16)         # im2col layout
        scale = jnp.zeros((1, cout_p), jnp.float32).at[0, :cout].set(p["scale"])
        shift = jnp.zeros((1, cout_p), jnp.float32).at[0, :cout].set(p["shift"])
        args += [w, scale, shift]
        in_specs += [
            pl.BlockSpec((K * cin_p, cout_p), lambda b, t: (0, 0)),
            pl.BlockSpec((1, cout_p), lambda b, t: (0, 0)),
            pl.BlockSpec((1, cout_p), lambda b, t: (0, 0)),
        ]
        flops += 2 * B * T_pad * K * cin_p * cout_p
        bytes_acc += w.size * 2 + scale.size * 4 + shift.size * 4
        if l < n_layers - 1:
            trans += B * T_pad * cout_p
    bytes_acc += B * T_pad * dims_p[-1] * 4

    kernel = functools.partial(
        _postnet_fused_kernel,
        n_layers=n_layers, K=K, tile_t=tile_t, halo=halo, seq_len=T,
    )
    out = pl.pallas_call(
        kernel,
        out_shape=jax.ShapeDtypeStruct((B, T_pad, dims_p[-1]), jnp.float32),
        grid=(B, n_tiles),
        in_specs=in_specs,
        out_specs=pl.BlockSpec((1, tile_t, dims_p[-1]), lambda b, t: (b, t, 0)),
        compiler_params=pltpu.CompilerParams(
            dimension_semantics=("parallel", "parallel")),
        cost_estimate=pl.CostEstimate(
            flops=flops, transcendentals=trans, bytes_accessed=bytes_acc),
    )(*args)
    out = out[:, :T, :C0]                    # drop time + channel padding
    return jnp.transpose(out, (0, 2, 1))     # back to (B, n_mel, T)


def init_postnet_params(key, n_mel, emb_dim, kernel_size, n_convs):
    """Deterministic synthetic parameters matching Postnet.__init__ shapes."""
    layers = []
    dims = [n_mel] + [emb_dim] * (n_convs - 1) + [n_mel]
    eps = 1e-5
    for i in range(n_convs):
        cin, cout = dims[i], dims[i + 1]
        key, kw, kb = jax.random.split(key, 3)
        # weight stored as (K, Cin, Cout); PyTorch stores (Cout, Cin, K).
        w = 0.1 * jax.random.normal(kw, (kernel_size, cin, cout), jnp.float32)
        conv_b = 0.1 * jax.random.normal(kb, (cout,), jnp.float32)
        # BatchNorm1d (eval) running stats.
        gamma = jnp.ones((cout,), jnp.float32)
        beta = jnp.zeros((cout,), jnp.float32)
        run_mean = jnp.zeros((cout,), jnp.float32)
        run_var = jnp.ones((cout,), jnp.float32)
        # Fold conv bias + BN into a per-channel affine.
        scale = gamma / jnp.sqrt(run_var + eps)
        shift = (conv_b - run_mean) * scale + beta
        layers.append({"w": w, "scale": scale, "shift": shift})
    return layers


def postnet_reference(x_ncl, params):
    """Pure-JAX reference (same bf16 MXU operands, f32 accumulation/epilogue)."""
    x = jnp.transpose(x_ncl, (0, 2, 1))
    n = len(params)
    for i, p in enumerate(params):
        K = p["w"].shape[0]
        pad = (K - 1) // 2
        T = x.shape[1]
        xp = jnp.pad(x, ((0, 0), (pad, pad), (0, 0)))
        lhs = jnp.concatenate([xp[:, k:k + T, :] for k in range(K)], axis=-1)
        w = p["w"].reshape(-1, p["w"].shape[-1])
        y = jax.lax.dot_general(
            lhs.astype(jnp.bfloat16), w.astype(jnp.bfloat16),
            (((2,), (0,)), ((), ())), preferred_element_type=jnp.float32)
        y = y * p["scale"][None, None, :] + p["shift"][None, None, :]
        if i < n - 1:
            y = jnp.tanh(y)
        x = y
    return jnp.transpose(x, (0, 2, 1))


if __name__ == "__main__":
    # Small hparams consistent with Postnet.__init__.
    B = 2
    n_mel_channels = 16
    postnet_embedding_dim = 32
    postnet_kernel_size = 5
    postnet_n_convolutions = 5
    T = 16

    key = jax.random.PRNGKey(0)
    key, kx = jax.random.split(key)
    x = jax.random.normal(kx, (B, n_mel_channels, T), jnp.float32)

    params = init_postnet_params(
        key, n_mel_channels, postnet_embedding_dim,
        postnet_kernel_size, postnet_n_convolutions,
    )

    out = jax.jit(postnet_forward)(x, params)
    out = jax.block_until_ready(out)
    assert out.shape == (B, n_mel_channels, T), out.shape
    assert jnp.all(jnp.isfinite(out))

    ref = jax.block_until_ready(postnet_reference(x, params))
    max_diff = float(jnp.max(jnp.abs(out - ref)))
    assert max_diff < 5e-2, f"mismatch vs reference: {max_diff}"

    print("KERNEL_OK")
</pallas_src>

<mosaic_0001>
module attributes {stable_mosaic.version = 11 : i64} {
  func.func @_postnet_fused_kernel(%arg0: i32, %arg1: i32, %arg2: memref<1x1x36x128xbf16, #tpu.memory_space<vmem>>, %arg3: memref<640x128xbf16, #tpu.memory_space<vmem>>, %arg4: memref<1x128xf32, #tpu.memory_space<vmem>>, %arg5: memref<1x128xf32, #tpu.memory_space<vmem>>, %arg6: memref<640x128xbf16, #tpu.memory_space<vmem>>, %arg7: memref<1x128xf32, #tpu.memory_space<vmem>>, %arg8: memref<1x128xf32, #tpu.memory_space<vmem>>, %arg9: memref<640x128xbf16, #tpu.memory_space<vmem>>, %arg10: memref<1x128xf32, #tpu.memory_space<vmem>>, %arg11: memref<1x128xf32, #tpu.memory_space<vmem>>, %arg12: memref<640x128xbf16, #tpu.memory_space<vmem>>, %arg13: memref<1x128xf32, #tpu.memory_space<vmem>>, %arg14: memref<1x128xf32, #tpu.memory_space<vmem>>, %arg15: memref<640x128xbf16, #tpu.memory_space<vmem>>, %arg16: memref<1x128xf32, #tpu.memory_space<vmem>>, %arg17: memref<1x128xf32, #tpu.memory_space<vmem>>, %arg18: memref<1x16x128xf32, #tpu.memory_space<vmem>>) attributes {dimension_semantics = [#tpu.dimension_semantics<parallel>, #tpu.dimension_semantics<parallel>], iteration_bounds = array<i64: 2, 1>, scalar_prefetch = 0 : i64, scratch_operands = 0 : i64, tpu.core_type = #tpu.core_type<tc>, window_params = [{transform_indices = @transform_0, window_bounds = array<i64: 1, 1, 36, 128>}, {pipeline_mode = #tpu.pipeline_mode<synchronous>, transform_indices = @transform_1, window_bounds = array<i64: 640, 128>}, {pipeline_mode = #tpu.pipeline_mode<synchronous>, transform_indices = @transform_2, window_bounds = array<i64: 1, 128>}, {pipeline_mode = #tpu.pipeline_mode<synchronous>, transform_indices = @transform_3, window_bounds = array<i64: 1, 128>}, {pipeline_mode = #tpu.pipeline_mode<synchronous>, transform_indices = @transform_4, window_bounds = array<i64: 640, 128>}, {pipeline_mode = #tpu.pipeline_mode<synchronous>, transform_indices = @transform_5, window_bounds = array<i64: 1, 128>}, {pipeline_mode = #tpu.pipeline_mode<synchronous>, transform_indices = @transform_6, window_bounds = array<i64: 1, 128>}, {pipeline_mode = #tpu.pipeline_mode<synchronous>, transform_indices = @transform_7, window_bounds = array<i64: 640, 128>}, {pipeline_mode = #tpu.pipeline_mode<synchronous>, transform_indices = @transform_8, window_bounds = array<i64: 1, 128>}, {pipeline_mode = #tpu.pipeline_mode<synchronous>, transform_indices = @transform_9, window_bounds = array<i64: 1, 128>}, {pipeline_mode = #tpu.pipeline_mode<synchronous>, transform_indices = @transform_10, window_bounds = array<i64: 640, 128>}, {pipeline_mode = #tpu.pipeline_mode<synchronous>, transform_indices = @transform_11, window_bounds = array<i64: 1, 128>}, {pipeline_mode = #tpu.pipeline_mode<synchronous>, transform_indices = @transform_12, window_bounds = array<i64: 1, 128>}, {pipeline_mode = #tpu.pipeline_mode<synchronous>, transform_indices = @transform_13, window_bounds = array<i64: 640, 128>}, {pipeline_mode = #tpu.pipeline_mode<synchronous>, transform_indices = @transform_14, window_bounds = array<i64: 1, 128>}, {pipeline_mode = #tpu.pipeline_mode<synchronous>, transform_indices = @transform_15, window_bounds = array<i64: 1, 128>}, {transform_indices = @transform_16, window_bounds = array<i64: 1, 16, 128>}]} {
    %c16_i32 = arith.constant 16 : i32
    %0 = arith.muli %arg1, %c16_i32 : i32
    %c0 = arith.constant 0 : index
    %c0_0 = arith.constant 0 : index
    %c0_1 = arith.constant 0 : index
    %c0_2 = arith.constant 0 : index
    %1 = vector.load %arg2[%c0, %c0_0, %c0_1, %c0_2] : memref<1x1x36x128xbf16, #tpu.memory_space<vmem>>, vector<1x1x36x128xbf16>
    %2 = vector.shape_cast %1 : vector<1x1x36x128xbf16> to vector<36x128xbf16>
    %3 = vector.extract_strided_slice %2 {offsets = [0, 0], sizes = [32, 128], strides = [1, 1]} : vector<36x128xbf16> to vector<32x128xbf16>
    %4 = vector.extract_strided_slice %2 {offsets = [1, 0], sizes = [32, 128], strides = [1, 1]} : vector<36x128xbf16> to vector<32x128xbf16>
    %5 = vector.extract_strided_slice %2 {offsets = [2, 0], sizes = [32, 128], strides = [1, 1]} : vector<36x128xbf16> to vector<32x128xbf16>
    %6 = vector.extract_strided_slice %2 {offsets = [3, 0], sizes = [32, 128], strides = [1, 1]} : vector<36x128xbf16> to vector<32x128xbf16>
    %7 = vector.extract_strided_slice %2 {offsets = [4, 0], sizes = [32, 128], strides = [1, 1]} : vector<36x128xbf16> to vector<32x128xbf16>
    %8 = tpu.concatenate %3, %4, %5, %6, %7 in 1 : vector<32x128xbf16>, vector<32x128xbf16>, vector<32x128xbf16>, vector<32x128xbf16>, vector<32x128xbf16> -> vector<32x640xbf16>
    %c0_3 = arith.constant 0 : index
    %c0_4 = arith.constant 0 : index
    %9 = vector.load %arg3[%c0_3, %c0_4] : memref<640x128xbf16, #tpu.memory_space<vmem>>, vector<640x128xbf16>
    %cst = arith.constant dense<0.000000e+00> : vector<32x128xf32>
    %10 = tpu.matmul %8, %9, %cst {dimension_numbers = #tpu.dot_dimension_numbers<[1], [0], [0], [1], [0, 0, 1, 1], [], []>} : vector<32x640xbf16>, vector<640x128xbf16>, vector<32x128xf32> -> vector<32x128xf32>
    %c0_5 = arith.constant 0 : index
    %c0_6 = arith.constant 0 : index
    %11 = vector.load %arg4[%c0_5, %c0_6] : memref<1x128xf32, #tpu.memory_space<vmem>>, vector<1x128xf32>
    %12 = vector.broadcast %11 : vector<1x128xf32> to vector<32x128xf32>
    %13 = arith.mulf %10, %12 : vector<32x128xf32>
    %c0_7 = arith.constant 0 : index
    %c0_8 = arith.constant 0 : index
    %14 = vector.load %arg5[%c0_7, %c0_8] : memref<1x128xf32, #tpu.memory_space<vmem>>, vector<1x128xf32>
    %15 = vector.broadcast %14 : vector<1x128xf32> to vector<32x128xf32>
    %16 = arith.addf %13, %15 : vector<32x128xf32>
    %17 = math.tanh %16 : vector<32x128xf32>
    %c10_i32 = arith.constant 10 : i32
    %18 = arith.subi %0, %c10_i32 : i32
    %c2_i32 = arith.constant 2 : i32
    %19 = arith.addi %18, %c2_i32 : i32
    %20 = tpu.iota {dimensions = array<i32: 0>} : vector<32x1xi32>
    %21 = vector.broadcast %19 : i32 to vector<32x1xi32>
    %22 = arith.addi %21, %20 : vector<32x1xi32>
    %c0_i32 = arith.constant 0 : i32
    %23 = vector.broadcast %c0_i32 : i32 to vector<32x1xi32>
    %24 = arith.cmpi sge, %22, %23 : vector<32x1xi32>
    %c16_i32_9 = arith.constant 16 : i32
    %25 = vector.broadcast %c16_i32_9 : i32 to vector<32x1xi32>
    %26 = arith.cmpi slt, %22, %25 : vector<32x1xi32>
    %27 = arith.andi %24, %26 : vector<32x1xi1>
    %cst_10 = arith.constant 0.000000e+00 : f32
    %28 = vector.shape_cast %27 : vector<32x1xi1> to vector<32x1xi1>
    %29 = vector.broadcast %28 : vector<32x1xi1> to vector<32x128xi1>
    %30 = vector.broadcast %cst_10 : f32 to vector<32x128xf32>
    %31 = arith.select %29, %17, %30 : vector<32x128xi1>, vector<32x128xf32>
    %32 = arith.truncf %31 : vector<32x128xf32> to vector<32x128xbf16>
    %33 = vector.extract_strided_slice %32 {offsets = [0, 0], sizes = [28, 128], strides = [1, 1]} : vector<32x128xbf16> to vector<28x128xbf16>
    %34 = vector.extract_strided_slice %32 {offsets = [1, 0], sizes = [28, 128], strides = [1, 1]} : vector<32x128xbf16> to vector<28x128xbf16>
    %35 = vector.extract_strided_slice %32 {offsets = [2, 0], sizes = [28, 128], strides = [1, 1]} : vector<32x128xbf16> to vector<28x128xbf16>
    %36 = vector.extract_strided_slice %32 {offsets = [3, 0], sizes = [28, 128], strides = [1, 1]} : vector<32x128xbf16> to vector<28x128xbf16>
    %37 = vector.extract_strided_slice %32 {offsets = [4, 0], sizes = [28, 128], strides = [1, 1]} : vector<32x128xbf16> to vector<28x128xbf16>
    %38 = tpu.concatenate %33, %34, %35, %36, %37 in 1 : vector<28x128xbf16>, vector<28x128xbf16>, vector<28x128xbf16>, vector<28x128xbf16>, vector<28x128xbf16> -> vector<28x640xbf16>
    %c0_11 = arith.constant 0 : index
    %c0_12 = arith.constant 0 : index
    %39 = vector.load %arg6[%c0_11, %c0_12] : memref<640x128xbf16, #tpu.memory_space<vmem>>, vector<640x128xbf16>
    %cst_13 = arith.constant dense<0.000000e+00> : vector<28x128xf32>
    %40 = tpu.matmul %38, %39, %cst_13 {dimension_numbers = #tpu.dot_dimension_numbers<[1], [0], [0], [1], [0, 0, 1, 1], [], []>} : vector<28x640xbf16>, vector<640x128xbf16>, vector<28x128xf32> -> vector<28x128xf32>
    %c0_14 = arith.constant 0 : index
    %c0_15 = arith.constant 0 : index
    %41 = vector.load %arg7[%c0_14, %c0_15] : memref<1x128xf32, #tpu.memory_space<vmem>>, vector<1x128xf32>
    %42 = vector.broadcast %41 : vector<1x128xf32> to vector<28x128xf32>
    %43 = arith.mulf %40, %42 : vector<28x128xf32>
    %c0_16 = arith.constant 0 : index
    %c0_17 = arith.constant 0 : index
    %44 = vector.load %arg8[%c0_16, %c0_17] : memref<1x128xf32, #tpu.memory_space<vmem>>, vector<1x128xf32>
    %45 = vector.broadcast %44 : vector<1x128xf32> to vector<28x128xf32>
    %46 = arith.addf %43, %45 : vector<28x128xf32>
    %47 = math.tanh %46 : vector<28x128xf32>
    %c10_i32_18 = arith.constant 10 : i32
    %48 = arith.subi %0, %c10_i32_18 : i32
    %c4_i32 = arith.constant 4 : i32
    %49 = arith.addi %48, %c4_i32 : i32
    %50 = tpu.iota {dimensions = array<i32: 0>} : vector<28x1xi32>
    %51 = vector.broadcast %49 : i32 to vector<28x1xi32>
    %52 = arith.addi %51, %50 : vector<28x1xi32>
    %c0_i32_19 = arith.constant 0 : i32
    %53 = vector.broadcast %c0_i32_19 : i32 to vector<28x1xi32>
    %54 = arith.cmpi sge, %52, %53 : vector<28x1xi32>
    %c16_i32_20 = arith.constant 16 : i32
    %55 = vector.broadcast %c16_i32_20 : i32 to vector<28x1xi32>
    %56 = arith.cmpi slt, %52, %55 : vector<28x1xi32>
    %57 = arith.andi %54, %56 : vector<28x1xi1>
    %cst_21 = arith.constant 0.000000e+00 : f32
    %58 = vector.shape_cast %57 : vector<28x1xi1> to vector<28x1xi1>
    %59 = vector.broadcast %58 : vector<28x1xi1> to vector<28x128xi1>
    %60 = vector.broadcast %cst_21 : f32 to vector<28x128xf32>
    %61 = arith.select %59, %47, %60 : vector<28x128xi1>, vector<28x128xf32>
    %62 = arith.truncf %61 : vector<28x128xf32> to vector<28x128xbf16>
    %63 = vector.extract_strided_slice %62 {offsets = [0, 0], sizes = [24, 128], strides = [1, 1]} : vector<28x128xbf16> to vector<24x128xbf16>
    %64 = vector.extract_strided_slice %62 {offsets = [1, 0], sizes = [24, 128], strides = [1, 1]} : vector<28x128xbf16> to vector<24x128xbf16>
    %65 = vector.extract_strided_slice %62 {offsets = [2, 0], sizes = [24, 128], strides = [1, 1]} : vector<28x128xbf16> to vector<24x128xbf16>
    %66 = vector.extract_strided_slice %62 {offsets = [3, 0], sizes = [24, 128], strides = [1, 1]} : vector<28x128xbf16> to vector<24x128xbf16>
    %67 = vector.extract_strided_slice %62 {offsets = [4, 0], sizes = [24, 128], strides = [1, 1]} : vector<28x128xbf16> to vector<24x128xbf16>
    %68 = tpu.concatenate %63, %64, %65, %66, %67 in 1 : vector<24x128xbf16>, vector<24x128xbf16>, vector<24x128xbf16>, vector<24x128xbf16>, vector<24x128xbf16> -> vector<24x640xbf16>
    %c0_22 = arith.constant 0 : index
    %c0_23 = arith.constant 0 : index
    %69 = vector.load %arg9[%c0_22, %c0_23] : memref<640x128xbf16, #tpu.memory_space<vmem>>, vector<640x128xbf16>
    %cst_24 = arith.constant dense<0.000000e+00> : vector<24x128xf32>
    %70 = tpu.matmul %68, %69, %cst_24 {dimension_numbers = #tpu.dot_dimension_numbers<[1], [0], [0], [1], [0, 0, 1, 1], [], []>} : vector<24x640xbf16>, vector<640x128xbf16>, vector<24x128xf32> -> vector<24x128xf32>
    %c0_25 = arith.constant 0 : index
    %c0_26 = arith.constant 0 : index
    %71 = vector.load %arg10[%c0_25, %c0_26] : memref<1x128xf32, #tpu.memory_space<vmem>>, vector<1x128xf32>
    %72 = vector.broadcast %71 : vector<1x128xf32> to vector<24x128xf32>
    %73 = arith.mulf %70, %72 : vector<24x128xf32>
    %c0_27 = arith.constant 0 : index
    %c0_28 = arith.constant 0 : index
    %74 = vector.load %arg11[%c0_27, %c0_28] : memref<1x128xf32, #tpu.memory_space<vmem>>, vector<1x128xf32>
    %75 = vector.broadcast %74 : vector<1x128xf32> to vector<24x128xf32>
    %76 = arith.addf %73, %75 : vector<24x128xf32>
    %77 = math.tanh %76 : vector<24x128xf32>
    %c10_i32_29 = arith.constant 10 : i32
    %78 = arith.subi %0, %c10_i32_29 : i32
    %c6_i32 = arith.constant 6 : i32
    %79 = arith.addi %78, %c6_i32 : i32
    %80 = tpu.iota {dimensions = array<i32: 0>} : vector<24x1xi32>
    %81 = vector.broadcast %79 : i32 to vector<24x1xi32>
    %82 = arith.addi %81, %80 : vector<24x1xi32>
    %c0_i32_30 = arith.constant 0 : i32
    %83 = vector.broadcast %c0_i32_30 : i32 to vector<24x1xi32>
    %84 = arith.cmpi sge, %82, %83 : vector<24x1xi32>
    %c16_i32_31 = arith.constant 16 : i32
    %85 = vector.broadcast %c16_i32_31 : i32 to vector<24x1xi32>
    %86 = arith.cmpi slt, %82, %85 : vector<24x1xi32>
    %87 = arith.andi %84, %86 : vector<24x1xi1>
    %cst_32 = arith.constant 0.000000e+00 : f32
    %88 = vector.shape_cast %87 : vector<24x1xi1> to vector<24x1xi1>
    %89 = vector.broadcast %88 : vector<24x1xi1> to vector<24x128xi1>
    %90 = vector.broadcast %cst_32 : f32 to vector<24x128xf32>
    %91 = arith.select %89, %77, %90 : vector<24x128xi1>, vector<24x128xf32>
    %92 = arith.truncf %91 : vector<24x128xf32> to vector<24x128xbf16>
    %93 = vector.extract_strided_slice %92 {offsets = [0, 0], sizes = [20, 128], strides = [1, 1]} : vector<24x128xbf16> to vector<20x128xbf16>
    %94 = vector.extract_strided_slice %92 {offsets = [1, 0], sizes = [20, 128], strides = [1, 1]} : vector<24x128xbf16> to vector<20x128xbf16>
    %95 = vector.extract_strided_slice %92 {offsets = [2, 0], sizes = [20, 128], strides = [1, 1]} : vector<24x128xbf16> to vector<20x128xbf16>
    %96 = vector.extract_strided_slice %92 {offsets = [3, 0], sizes = [20, 128], strides = [1, 1]} : vector<24x128xbf16> to vector<20x128xbf16>
    %97 = vector.extract_strided_slice %92 {offsets = [4, 0], sizes = [20, 128], strides = [1, 1]} : vector<24x128xbf16> to vector<20x128xbf16>
    %98 = tpu.concatenate %93, %94, %95, %96, %97 in 1 : vector<20x128xbf16>, vector<20x128xbf16>, vector<20x128xbf16>, vector<20x128xbf16>, vector<20x128xbf16> -> vector<20x640xbf16>
    %c0_33 = arith.constant 0 : index
    %c0_34 = arith.constant 0 : index
    %99 = vector.load %arg12[%c0_33, %c0_34] : memref<640x128xbf16, #tpu.memory_space<vmem>>, vector<640x128xbf16>
    %cst_35 = arith.constant dense<0.000000e+00> : vector<20x128xf32>
    %100 = tpu.matmul %98, %99, %cst_35 {dimension_numbers = #tpu.dot_dimension_numbers<[1], [0], [0], [1], [0, 0, 1, 1], [], []>} : vector<20x640xbf16>, vector<640x128xbf16>, vector<20x128xf32> -> vector<20x128xf32>
    %c0_36 = arith.constant 0 : index
    %c0_37 = arith.constant 0 : index
    %101 = vector.load %arg13[%c0_36, %c0_37] : memref<1x128xf32, #tpu.memory_space<vmem>>, vector<1x128xf32>
    %102 = vector.broadcast %101 : vector<1x128xf32> to vector<20x128xf32>
    %103 = arith.mulf %100, %102 : vector<20x128xf32>
    %c0_38 = arith.constant 0 : index
    %c0_39 = arith.constant 0 : index
    %104 = vector.load %arg14[%c0_38, %c0_39] : memref<1x128xf32, #tpu.memory_space<vmem>>, vector<1x128xf32>
    %105 = vector.broadcast %104 : vector<1x128xf32> to vector<20x128xf32>
    %106 = arith.addf %103, %105 : vector<20x128xf32>
    %107 = math.tanh %106 : vector<20x128xf32>
    %c10_i32_40 = arith.constant 10 : i32
    %108 = arith.subi %0, %c10_i32_40 : i32
    %c8_i32 = arith.constant 8 : i32
    %109 = arith.addi %108, %c8_i32 : i32
    %110 = tpu.iota {dimensions = array<i32: 0>} : vector<20x1xi32>
    %111 = vector.broadcast %109 : i32 to vector<20x1xi32>
    %112 = arith.addi %111, %110 : vector<20x1xi32>
    %c0_i32_41 = arith.constant 0 : i32
    %113 = vector.broadcast %c0_i32_41 : i32 to vector<20x1xi32>
    %114 = arith.cmpi sge, %112, %113 : vector<20x1xi32>
    %c16_i32_42 = arith.constant 16 : i32
    %115 = vector.broadcast %c16_i32_42 : i32 to vector<20x1xi32>
    %116 = arith.cmpi slt, %112, %115 : vector<20x1xi32>
    %117 = arith.andi %114, %116 : vector<20x1xi1>
    %cst_43 = arith.constant 0.000000e+00 : f32
    %118 = vector.shape_cast %117 : vector<20x1xi1> to vector<20x1xi1>
    %119 = vector.broadcast %118 : vector<20x1xi1> to vector<20x128xi1>
    %120 = vector.broadcast %cst_43 : f32 to vector<20x128xf32>
    %121 = arith.select %119, %107, %120 : vector<20x128xi1>, vector<20x128xf32>
    %122 = arith.truncf %121 : vector<20x128xf32> to vector<20x128xbf16>
    %123 = vector.extract_strided_slice %122 {offsets = [0, 0], sizes = [16, 128], strides = [1, 1]} : vector<20x128xbf16> to vector<16x128xbf16>
    %124 = vector.extract_strided_slice %122 {offsets = [1, 0], sizes = [16, 128], strides = [1, 1]} : vector<20x128xbf16> to vector<16x128xbf16>
    %125 = vector.extract_strided_slice %122 {offsets = [2, 0], sizes = [16, 128], strides = [1, 1]} : vector<20x128xbf16> to vector<16x128xbf16>
    %126 = vector.extract_strided_slice %122 {offsets = [3, 0], sizes = [16, 128], strides = [1, 1]} : vector<20x128xbf16> to vector<16x128xbf16>
    %127 = vector.extract_strided_slice %122 {offsets = [4, 0], sizes = [16, 128], strides = [1, 1]} : vector<20x128xbf16> to vector<16x128xbf16>
    %128 = tpu.concatenate %123, %124, %125, %126, %127 in 1 : vector<16x128xbf16>, vector<16x128xbf16>, vector<16x128xbf16>, vector<16x128xbf16>, vector<16x128xbf16> -> vector<16x640xbf16>
    %c0_44 = arith.constant 0 : index
    %c0_45 = arith.constant 0 : index
    %129 = vector.load %arg15[%c0_44, %c0_45] : memref<640x128xbf16, #tpu.memory_space<vmem>>, vector<640x128xbf16>
    %cst_46 = arith.constant dense<0.000000e+00> : vector<16x128xf32>
    %130 = tpu.matmul %128, %129, %cst_46 {dimension_numbers = #tpu.dot_dimension_numbers<[1], [0], [0], [1], [0, 0, 1, 1], [], []>} : vector<16x640xbf16>, vector<640x128xbf16>, vector<16x128xf32> -> vector<16x128xf32>
    %c0_47 = arith.constant 0 : index
    %c0_48 = arith.constant 0 : index
    %131 = vector.load %arg16[%c0_47, %c0_48] : memref<1x128xf32, #tpu.memory_space<vmem>>, vector<1x128xf32>
    %132 = vector.broadcast %131 : vector<1x128xf32> to vector<16x128xf32>
    %133 = arith.mulf %130, %132 : vector<16x128xf32>
    %c0_49 = arith.constant 0 : index
    %c0_50 = arith.constant 0 : index
    %134 = vector.load %arg17[%c0_49, %c0_50] : memref<1x128xf32, #tpu.memory_space<vmem>>, vector<1x128xf32>
    %135 = vector.broadcast %134 : vector<1x128xf32> to vector<16x128xf32>
    %136 = arith.addf %133, %135 : vector<16x128xf32>
    %c0_51 = arith.constant 0 : index
    %c0_52 = arith.constant 0 : index
    %c0_53 = arith.constant 0 : index
    %137 = vector.load %arg18[%c0_51, %c0_52, %c0_53] : memref<1x16x128xf32, #tpu.memory_space<vmem>>, vector<1x16x128xf32>
    %138 = vector.shape_cast %137 : vector<1x16x128xf32> to vector<16x128xf32>
    %139 = vector.shape_cast %136 : vector<16x128xf32> to vector<1x16x128xf32>
    tpu.vector_store %arg18[%c0_51, %c0_52, %c0_53], %139 {strides = array<i32>} : memref<1x16x128xf32, #tpu.memory_space<vmem>>, vector<1x16x128xf32>,
    return
  }
  func.func @transform_0(%arg0: i32, %arg1: i32) -> (i32, i32, i32, i32) {
    %c0_i32 = arith.constant 0 : i32
    %c0_i32_0 = arith.constant 0 : i32
    %c0_i32_1 = arith.constant 0 : i32
    return %arg0, %arg1, %c0_i32, %c0_i32_0 : i32, i32, i32, i32
  }
  func.func @transform_1(%arg0: i32, %arg1: i32) -> (i32, i32) {
    %c0_i32 = arith.constant 0 : i32
    %c0_i32_0 = arith.constant 0 : i32
    %c0_i32_1 = arith.constant 0 : i32
    return %c0_i32, %c0_i32_0 : i32, i32
  }
  func.func @transform_2(%arg0: i32, %arg1: i32) -> (i32, i32) {
    %c0_i32 = arith.constant 0 : i32
    %c0_i32_0 = arith.constant 0 : i32
    %c0_i32_1 = arith.constant 0 : i32
    return %c0_i32, %c0_i32_0 : i32, i32
  }
  func.func @transform_3(%arg0: i32, %arg1: i32) -> (i32, i32) {
    %c0_i32 = arith.constant 0 : i32
    %c0_i32_0 = arith.constant 0 : i32
    %c0_i32_1 = arith.constant 0 : i32
    return %c0_i32, %c0_i32_0 : i32, i32
  }
  func.func @transform_4(%arg0: i32, %arg1: i32) -> (i32, i32) {
    %c0_i32 = arith.constant 0 : i32
    %c0_i32_0 = arith.constant 0 : i32
    %c0_i32_1 = arith.constant 0 : i32
    return %c0_i32, %c0_i32_0 : i32, i32
  }
  func.func @transform_5(%arg0: i32, %arg1: i32) -> (i32, i32) {
    %c0_i32 = arith.constant 0 : i32
    %c0_i32_0 = arith.constant 0 : i32
    %c0_i32_1 = arith.constant 0 : i32
    return %c0_i32, %c0_i32_0 : i32, i32
  }
  func.func @transform_6(%arg0: i32, %arg1: i32) -> (i32, i32) {
    %c0_i32 = arith.constant 0 : i32
    %c0_i32_0 = arith.constant 0 : i32
    %c0_i32_1 = arith.constant 0 : i32
    return %c0_i32, %c0_i32_0 : i32, i32
  }
  func.func @transform_7(%arg0: i32, %arg1: i32) -> (i32, i32) {
    %c0_i32 = arith.constant 0 : i32
    %c0_i32_0 = arith.constant 0 : i32
    %c0_i32_1 = arith.constant 0 : i32
    return %c0_i32, %c0_i32_0 : i32, i32
  }
  func.func @transform_8(%arg0: i32, %arg1: i32) -> (i32, i32) {
    %c0_i32 = arith.constant 0 : i32
    %c0_i32_0 = arith.constant 0 : i32
    %c0_i32_1 = arith.constant 0 : i32
    return %c0_i32, %c0_i32_0 : i32, i32
  }
  func.func @transform_9(%arg0: i32, %arg1: i32) -> (i32, i32) {
    %c0_i32 = arith.constant 0 : i32
    %c0_i32_0 = arith.constant 0 : i32
    %c0_i32_1 = arith.constant 0 : i32
    return %c0_i32, %c0_i32_0 : i32, i32
  }
  func.func @transform_10(%arg0: i32, %arg1: i32) -> (i32, i32) {
    %c0_i32 = arith.constant 0 : i32
    %c0_i32_0 = arith.constant 0 : i32
    %c0_i32_1 = arith.constant 0 : i32
    return %c0_i32, %c0_i32_0 : i32, i32
  }
  func.func @transform_11(%arg0: i32, %arg1: i32) -> (i32, i32) {
    %c0_i32 = arith.constant 0 : i32
    %c0_i32_0 = arith.constant 0 : i32
    %c0_i32_1 = arith.constant 0 : i32
    return %c0_i32, %c0_i32_0 : i32, i32
  }
  func.func @transform_12(%arg0: i32, %arg1: i32) -> (i32, i32) {
    %c0_i32 = arith.constant 0 : i32
    %c0_i32_0 = arith.constant 0 : i32
    %c0_i32_1 = arith.constant 0 : i32
    return %c0_i32, %c0_i32_0 : i32, i32
  }
  func.func @transform_13(%arg0: i32, %arg1: i32) -> (i32, i32) {
    %c0_i32 = arith.constant 0 : i32
    %c0_i32_0 = arith.constant 0 : i32
    %c0_i32_1 = arith.constant 0 : i32
    return %c0_i32, %c0_i32_0 : i32, i32
  }
  func.func @transform_14(%arg0: i32, %arg1: i32) -> (i32, i32) {
    %c0_i32 = arith.constant 0 : i32
    %c0_i32_0 = arith.constant 0 : i32
    %c0_i32_1 = arith.constant 0 : i32
    return %c0_i32, %c0_i32_0 : i32, i32
  }
  func.func @transform_15(%arg0: i32, %arg1: i32) -> (i32, i32) {
    %c0_i32 = arith.constant 0 : i32
    %c0_i32_0 = arith.constant 0 : i32
    %c0_i32_1 = arith.constant 0 : i32
    return %c0_i32, %c0_i32_0 : i32, i32
  }
  func.func @transform_16(%arg0: i32, %arg1: i32) -> (i32, i32, i32) {
    %c0_i32 = arith.constant 0 : i32
    %c0_i32_0 = arith.constant 0 : i32
    return %arg0, %arg1, %c0_i32 : i32, i32, i32
  }
}

</mosaic_0001>

<llo_original>
// kernel: postnet_forward.1
$region0: #{postnet_forward.1}
  #allocation0 [shape = 'u32[]', space=smem, size = 0x4, offset = 0x4, fixed_abs, tag = 'smem constant byte address 0x4 - core index']
  #allocation1 [shape = 'u32[72,128]{1,0:T(1,128)}', space=vmem, size = 0x9000, scoped, tag = 'internal scratch']
  %s0 = inlined_call_operand.vmem [shape: bf16[2,1,36,128], index: 0, kind: input, shape index: {}]
  %s1 = inlined_call_operand.vmem [shape: bf16[640,128], index: 1, kind: input, shape index: {}]
  %s2 = inlined_call_operand.vmem [shape: f32[1,128], index: 2, kind: input, shape index: {}]
  %s3 = inlined_call_operand.vmem [shape: f32[1,128], index: 3, kind: input, shape index: {}]
  %s4 = inlined_call_operand.vmem [shape: bf16[640,128], index: 4, kind: input, shape index: {}]
  %s5 = inlined_call_operand.vmem [shape: f32[1,128], index: 5, kind: input, shape index: {}]
  %s6 = inlined_call_operand.vmem [shape: f32[1,128], index: 6, kind: input, shape index: {}]
  %s7 = inlined_call_operand.vmem [shape: bf16[640,128], index: 7, kind: input, shape index: {}]
  %s8 = inlined_call_operand.vmem [shape: f32[1,128], index: 8, kind: input, shape index: {}]
  %s9 = inlined_call_operand.vmem [shape: f32[1,128], index: 9, kind: input, shape index: {}]
  %s10 = inlined_call_operand.vmem [shape: bf16[640,128], index: 10, kind: input, shape index: {}]
  %s11 = inlined_call_operand.vmem [shape: f32[1,128], index: 11, kind: input, shape index: {}]
  %s12 = inlined_call_operand.vmem [shape: f32[1,128], index: 12, kind: input, shape index: {}]
  %s13 = inlined_call_operand.vmem [shape: bf16[640,128], index: 13, kind: input, shape index: {}]
  %s14 = inlined_call_operand.vmem [shape: f32[1,128], index: 14, kind: input, shape index: {}]
  %s15 = inlined_call_operand.vmem [shape: f32[1,128], index: 15, kind: input, shape index: {}]
  %s16 = inlined_call_operand.vmem [shape: f32[2,16,128], index: 16, kind: output, shape index: {}]
  %s17 = sld [smem:[#allocation0]]
  $region97: #{postnet_forward.1} parent=0
    _
  %s19 = ssub.s32 1, %s17
  %s20 = scalar_select 0, %s19, %s17
  loop: start=0, step=1, limit=4
  $region2: #{postnet_forward.1} parent=0 // loop_pre_header
    _
  $region3: #{postnet_forward.1} parent=0 // loop_header
    %s22 = sphi 0, %s26
    %p23 = scmp.ge.s32.totalorder %s22, 4
    %s29 = sphi 0, %s41
    %s30 = sphi 0, %s37
    %s31 = sphi 0, %s29
    %s32 = sphi 0, %s30
    %s33 = sphi 0, %s31
    %s34 = sphi 0, %s32
    %s46 = sphi 0, %s48
    %s49 = sphi 0, %s46
    %s50 = sphi 0, %s49
    %s66 = sphi 0, %s50
    %s70 = sphi 0, %s70
    %s72 = sphi 0, %s70
    %s73 = sphi 0, %s72
    %s87 = sphi 0, %s73
    %s91 = sphi 0, %s91
    %s93 = sphi 0, %s91
    %s94 = sphi 0, %s93
    %s108 = sphi 0, %s94
    %s112 = sphi 0, %s112
    %s114 = sphi 0, %s112
    %s115 = sphi 0, %s114
    %s129 = sphi 0, %s115
    %s133 = sphi 0, %s133
    %s135 = sphi 0, %s133
    %s136 = sphi 0, %s135
    %s150 = sphi 0, %s136
    %s154 = sphi 0, %s154
    %s156 = sphi 0, %s154
    %s157 = sphi 0, %s156
    %s171 = sphi 0, %s157
    %s175 = sphi 0, %s175
    %s177 = sphi 0, %s175
    %s178 = sphi 0, %s177
    %s192 = sphi 0, %s178
    %s196 = sphi 0, %s196
    %s198 = sphi 0, %s196
    %s199 = sphi 0, %s198
    %s213 = sphi 0, %s199
    %s217 = sphi 0, %s217
    %s219 = sphi 0, %s217
    %s220 = sphi 0, %s219
    %s234 = sphi 0, %s220
    %s238 = sphi 0, %s238
    %s240 = sphi 0, %s238
    %s241 = sphi 0, %s240
    %s255 = sphi 0, %s241
    %s259 = sphi 0, %s259
    %s261 = sphi 0, %s259
    %s262 = sphi 0, %s261
    %s276 = sphi 0, %s262
    %s280 = sphi 0, %s280
    %s282 = sphi 0, %s280
    %s283 = sphi 0, %s282
    %s297 = sphi 0, %s283
    %s301 = sphi 0, %s301
    %s303 = sphi 0, %s301
    %s304 = sphi 0, %s303
    %s318 = sphi 0, %s304
    %s322 = sphi 0, %s322
    %s324 = sphi 0, %s322
    %s325 = sphi 0, %s324
    %s339 = sphi 0, %s325
    %s343 = sphi 0, %s343
    %s345 = sphi 0, %s343
    %s346 = sphi 0, %s345
    %s360 = sphi 0, %s346
    %s364 = sphi 0, %s364
    %s366 = sphi 0, %s364
    %s367 = sphi 0, %s366
    %s381 = sphi 0, %s367
    %s389 = sphi 0, %s391
    %s392 = sphi 0, %s389
    %s393 = sphi 0, %s392
    %s409 = sphi 0, %s393
  $region4: #{postnet_forward.1} parent=0 // loop_header_branch
    %25 = sbr.rel (%p23) target = $region8
  $region5: #{postnet_forward.1} parent=0 // loop_body
    %s27 = ssub.s32 %s22, 1
    %s28 = ssub.s32 %s22, 2
    %s35 = sadd.s32 1, %s30
    %p36 = scmp.ge.s32.totalorder %s35, 1
    %s37 = scalar_select %p36, 0, %s35
    %s38 = sadd.s32 1, %s29
    %s39 = scalar_select %p36, %s38, %s29
    %p40 = scmp.ge.s32.totalorder %s39, 2
    %s41 = scalar_select %p40, 0, %s39
    %s42 = ssub.s32 %s29, %s41
    %s43 = ssub.s32 %s30, %s37
    %s44 = sor.u32 %s42, %s43
    %p45 = scmp.eq.s32.totalorder %s44, 0
    %s47 = sadd.s32 %s46, 1
    %s48 = scalar_select %p45, %s46, %s47
    %p51 = pneg %p45
    %p52 = scmp.eq.s32.totalorder %s22, 1
    %p53 = por %p51, %p52
    %p54 = scmp.ne.s32.totalorder %s46, %s49
    %p55 = scmp.eq.s32.totalorder %s22, 0
    %p56 = por %p54, %p55
    %p57 = scmp.ne.s32.totalorder %s46, %s49
    %p58 = scmp.eq.s32.totalorder %s27, 1
    %p59 = por %p57, %p58
    %p60 = scmp.ne.s32.totalorder %s49, %s50
    %p61 = scmp.eq.s32.totalorder %s27, 0
    %p62 = por %p60, %p61
    %p63 = scmp.ne.s32.totalorder %s49, %s50
    %p64 = scmp.eq.s32.totalorder %s28, 1
    %p65 = por %p63, %p64
    %p67 = scmp.ne.s32.totalorder %s50, %s66
    %p68 = scmp.eq.s32.totalorder %s28, 0
    %p69 = por %p67, %p68
    %s71 = sadd.s32 %s70, 1
    %p74 = scmp.eq.s32.totalorder %s22, 1
    %p75 = scmp.ne.s32.totalorder %s70, %s72
    %p76 = scmp.eq.s32.totalorder %s22, 0
    %p77 = por %p75, %p76
    %p78 = scmp.ne.s32.totalorder %s70, %s72
    %p79 = scmp.eq.s32.totalorder %s27, 1
    %p80 = por %p78, %p79
    %p81 = scmp.ne.s32.totalorder %s72, %s73
    %p82 = scmp.eq.s32.totalorder %s27, 0
    %p83 = por %p81, %p82
    %p84 = scmp.ne.s32.totalorder %s72, %s73
    %p85 = scmp.eq.s32.totalorder %s28, 1
    %p86 = por %p84, %p85
    %p88 = scmp.ne.s32.totalorder %s73, %s87
    %p89 = scmp.eq.s32.totalorder %s28, 0
    %p90 = por %p88, %p89
    %s92 = sadd.s32 %s91, 1
    %p95 = scmp.eq.s32.totalorder %s22, 1
    %p96 = scmp.ne.s32.totalorder %s91, %s93
    %p97 = scmp.eq.s32.totalorder %s22, 0
    %p98 = por %p96, %p97
    %p99 = scmp.ne.s32.totalorder %s91, %s93
    %p100 = scmp.eq.s32.totalorder %s27, 1
    %p101 = por %p99, %p100
    %p102 = scmp.ne.s32.totalorder %s93, %s94
    %p103 = scmp.eq.s32.totalorder %s27, 0
    %p104 = por %p102, %p103
    %p105 = scmp.ne.s32.totalorder %s93, %s94
    %p106 = scmp.eq.s32.totalorder %s28, 1
    %p107 = por %p105, %p106
    %p109 = scmp.ne.s32.totalorder %s94, %s108
    %p110 = scmp.eq.s32.totalorder %s28, 0
    %p111 = por %p109, %p110
    %s113 = sadd.s32 %s112, 1
    %p116 = scmp.eq.s32.totalorder %s22, 1
    %p117 = scmp.ne.s32.totalorder %s112, %s114
    %p118 = scmp.eq.s32.totalorder %s22, 0
    %p119 = por %p117, %p118
    %p120 = scmp.ne.s32.totalorder %s112, %s114
    %p121 = scmp.eq.s32.totalorder %s27, 1
    %p122 = por %p120, %p121
    %p123 = scmp.ne.s32.totalorder %s114, %s115
    %p124 = scmp.eq.s32.totalorder %s27, 0
    %p125 = por %p123, %p124
    %p126 = scmp.ne.s32.totalorder %s114, %s115
    %p127 = scmp.eq.s32.totalorder %s28, 1
    %p128 = por %p126, %p127
    %p130 = scmp.ne.s32.totalorder %s115, %s129
    %p131 = scmp.eq.s32.totalorder %s28, 0
    %p132 = por %p130, %p131
    %s134 = sadd.s32 %s133, 1
    %p137 = scmp.eq.s32.totalorder %s22, 1
    %p138 = scmp.ne.s32.totalorder %s133, %s135
    %p139 = scmp.eq.s32.totalorder %s22, 0
    %p140 = por %p138, %p139
    %p141 = scmp.ne.s32.totalorder %s133, %s135
    %p142 = scmp.eq.s32.totalorder %s27, 1
    %p143 = por %p141, %p142
    %p144 = scmp.ne.s32.totalorder %s135, %s136
    %p145 = scmp.eq.s32.totalorder %s27, 0
    %p146 = por %p144, %p145
    %p147 = scmp.ne.s32.totalorder %s135, %s136
    %p148 = scmp.eq.s32.totalorder %s28, 1
    %p149 = por %p147, %p148
    %p151 = scmp.ne.s32.totalorder %s136, %s150
    %p152 = scmp.eq.s32.totalorder %s28, 0
    %p153 = por %p151, %p152
    %s155 = sadd.s32 %s154, 1
    %p158 = scmp.eq.s32.totalorder %s22, 1
    %p159 = scmp.ne.s32.totalorder %s154, %s156
    %p160 = scmp.eq.s32.totalorder %s22, 0
    %p161 = por %p159, %p160
    %p162 = scmp.ne.s32.totalorder %s154, %s156
    %p163 = scmp.eq.s32.totalorder %s27, 1
    %p164 = por %p162, %p163
    %p165 = scmp.ne.s32.totalorder %s156, %s157
    %p166 = scmp.eq.s32.totalorder %s27, 0
    %p167 = por %p165, %p166
    %p168 = scmp.ne.s32.totalorder %s156, %s157
    %p169 = scmp.eq.s32.totalorder %s28, 1
    %p170 = por %p168, %p169
    %p172 = scmp.ne.s32.totalorder %s157, %s171
    %p173 = scmp.eq.s32.totalorder %s28, 0
    %p174 = por %p172, %p173
    %s176 = sadd.s32 %s175, 1
    %p179 = scmp.eq.s32.totalorder %s22, 1
    %p180 = scmp.ne.s32.totalorder %s175, %s177
    %p181 = scmp.eq.s32.totalorder %s22, 0
    %p182 = por %p180, %p181
    %p183 = scmp.ne.s32.totalorder %s175, %s177
    %p184 = scmp.eq.s32.totalorder %s27, 1
    %p185 = por %p183, %p184
    %p186 = scmp.ne.s32.totalorder %s177, %s178
    %p187 = scmp.eq.s32.totalorder %s27, 0
    %p188 = por %p186, %p187
    %p189 = scmp.ne.s32.totalorder %s177, %s178
    %p190 = scmp.eq.s32.totalorder %s28, 1
    %p191 = por %p189, %p190
    %p193 = scmp.ne.s32.totalorder %s178, %s192
    %p194 = scmp.eq.s32.totalorder %s28, 0
    %p195 = por %p193, %p194
    %s197 = sadd.s32 %s196, 1
    %p200 = scmp.eq.s32.totalorder %s22, 1
    %p201 = scmp.ne.s32.totalorder %s196, %s198
    %p202 = scmp.eq.s32.totalorder %s22, 0
    %p203 = por %p201, %p202
    %p204 = scmp.ne.s32.totalorder %s196, %s198
    %p205 = scmp.eq.s32.totalorder %s27, 1
    %p206 = por %p204, %p205
    %p207 = scmp.ne.s32.totalorder %s198, %s199
    %p208 = scmp.eq.s32.totalorder %s27, 0
    %p209 = por %p207, %p208
    %p210 = scmp.ne.s32.totalorder %s198, %s199
    %p211 = scmp.eq.s32.totalorder %s28, 1
    %p212 = por %p210, %p211
    %p214 = scmp.ne.s32.totalorder %s199, %s213
    %p215 = scmp.eq.s32.totalorder %s28, 0
    %p216 = por %p214, %p215
    %s218 = sadd.s32 %s217, 1
    %p221 = scmp.eq.s32.totalorder %s22, 1
    %p222 = scmp.ne.s32.totalorder %s217, %s219
    %p223 = scmp.eq.s32.totalorder %s22, 0
    %p224 = por %p222, %p223
    %p225 = scmp.ne.s32.totalorder %s217, %s219
    %p226 = scmp.eq.s32.totalorder %s27, 1
    %p227 = por %p225, %p226
    %p228 = scmp.ne.s32.totalorder %s219, %s220
    %p229 = scmp.eq.s32.totalorder %s27, 0
    %p230 = por %p228, %p229
    %p231 = scmp.ne.s32.totalorder %s219, %s220
    %p232 = scmp.eq.s32.totalorder %s28, 1
    %p233 = por %p231, %p232
    %p235 = scmp.ne.s32.totalorder %s220, %s234
    %p236 = scmp.eq.s32.totalorder %s28, 0
    %p237 = por %p235, %p236
    %s239 = sadd.s32 %s238, 1
    %p242 = scmp.eq.s32.totalorder %s22, 1
    %p243 = scmp.ne.s32.totalorder %s238, %s240
    %p244 = scmp.eq.s32.totalorder %s22, 0
    %p245 = por %p243, %p244
    %p246 = scmp.ne.s32.totalorder %s238, %s240
    %p247 = scmp.eq.s32.totalorder %s27, 1
    %p248 = por %p246, %p247
    %p249 = scmp.ne.s32.totalorder %s240, %s241
    %p250 = scmp.eq.s32.totalorder %s27, 0
    %p251 = por %p249, %p250
    %p252 = scmp.ne.s32.totalorder %s240, %s241
    %p253 = scmp.eq.s32.totalorder %s28, 1
    %p254 = por %p252, %p253
    %p256 = scmp.ne.s32.totalorder %s241, %s255
    %p257 = scmp.eq.s32.totalorder %s28, 0
    %p258 = por %p256, %p257
    %s260 = sadd.s32 %s259, 1
    %p263 = scmp.eq.s32.totalorder %s22, 1
    %p264 = scmp.ne.s32.totalorder %s259, %s261
    %p265 = scmp.eq.s32.totalorder %s22, 0
    %p266 = por %p264, %p265
    %p267 = scmp.ne.s32.totalorder %s259, %s261
    %p268 = scmp.eq.s32.totalorder %s27, 1
    %p269 = por %p267, %p268
    %p270 = scmp.ne.s32.totalorder %s261, %s262
    %p271 = scmp.eq.s32.totalorder %s27, 0
    %p272 = por %p270, %p271
    %p273 = scmp.ne.s32.totalorder %s261, %s262
    %p274 = scmp.eq.s32.totalorder %s28, 1
    %p275 = por %p273, %p274
    %p277 = scmp.ne.s32.totalorder %s262, %s276
    %p278 = scmp.eq.s32.totalorder %s28, 0
    %p279 = por %p277, %p278
    %s281 = sadd.s32 %s280, 1
    %p284 = scmp.eq.s32.totalorder %s22, 1
    %p285 = scmp.ne.s32.totalorder %s280, %s282
    %p286 = scmp.eq.s32.totalorder %s22, 0
    %p287 = por %p285, %p286
    %p288 = scmp.ne.s32.totalorder %s280, %s282
    %p289 = scmp.eq.s32.totalorder %s27, 1
    %p290 = por %p288, %p289
    %p291 = scmp.ne.s32.totalorder %s282, %s283
    %p292 = scmp.eq.s32.totalorder %s27, 0
    %p293 = por %p291, %p292
    %p294 = scmp.ne.s32.totalorder %s282, %s283
    %p295 = scmp.eq.s32.totalorder %s28, 1
    %p296 = por %p294, %p295
    %p298 = scmp.ne.s32.totalorder %s283, %s297
    %p299 = scmp.eq.s32.totalorder %s28, 0
    %p300 = por %p298, %p299
    %s302 = sadd.s32 %s301, 1
    %p305 = scmp.eq.s32.totalorder %s22, 1
    %p306 = scmp.ne.s32.totalorder %s301, %s303
    %p307 = scmp.eq.s32.totalorder %s22, 0
    %p308 = por %p306, %p307
    %p309 = scmp.ne.s32.totalorder %s301, %s303
    %p310 = scmp.eq.s32.totalorder %s27, 1
    %p311 = por %p309, %p310
    %p312 = scmp.ne.s32.totalorder %s303, %s304
    %p313 = scmp.eq.s32.totalorder %s27, 0
    %p314 = por %p312, %p313
    %p315 = scmp.ne.s32.totalorder %s303, %s304
    %p316 = scmp.eq.s32.totalorder %s28, 1
    %p317 = por %p315, %p316
    %p319 = scmp.ne.s32.totalorder %s304, %s318
    %p320 = scmp.eq.s32.totalorder %s28, 0
    %p321 = por %p319, %p320
    %s323 = sadd.s32 %s322, 1
    %p326 = scmp.eq.s32.totalorder %s22, 1
    %p327 = scmp.ne.s32.totalorder %s322, %s324
    %p328 = scmp.eq.s32.totalorder %s22, 0
    %p329 = por %p327, %p328
    %p330 = scmp.ne.s32.totalorder %s322, %s324
    %p331 = scmp.eq.s32.totalorder %s27, 1
    %p332 = por %p330, %p331
    %p333 = scmp.ne.s32.totalorder %s324, %s325
    %p334 = scmp.eq.s32.totalorder %s27, 0
    %p335 = por %p333, %p334
    %p336 = scmp.ne.s32.totalorder %s324, %s325
    %p337 = scmp.eq.s32.totalorder %s28, 1
    %p338 = por %p336, %p337
    %p340 = scmp.ne.s32.totalorder %s325, %s339
    %p341 = scmp.eq.s32.totalorder %s28, 0
    %p342 = por %p340, %p341
    %s344 = sadd.s32 %s343, 1
    %p347 = scmp.eq.s32.totalorder %s22, 1
    %p348 = scmp.ne.s32.totalorder %s343, %s345
    %p349 = scmp.eq.s32.totalorder %s22, 0
    %p350 = por %p348, %p349
    %p351 = scmp.ne.s32.totalorder %s343, %s345
    %p352 = scmp.eq.s32.totalorder %s27, 1
    %p353 = por %p351, %p352
    %p354 = scmp.ne.s32.totalorder %s345, %s346
    %p355 = scmp.eq.s32.totalorder %s27, 0
    %p356 = por %p354, %p355
    %p357 = scmp.ne.s32.totalorder %s345, %s346
    %p358 = scmp.eq.s32.totalorder %s28, 1
    %p359 = por %p357, %p358
    %p361 = scmp.ne.s32.totalorder %s346, %s360
    %p362 = scmp.eq.s32.totalorder %s28, 0
    %p363 = por %p361, %p362
    %s365 = sadd.s32 %s364, 1
    %p368 = scmp.eq.s32.totalorder %s22, 1
    %p369 = scmp.ne.s32.totalorder %s364, %s366
    %p370 = scmp.eq.s32.totalorder %s22, 0
    %p371 = por %p369, %p370
    %p372 = scmp.ne.s32.totalorder %s364, %s366
    %p373 = scmp.eq.s32.totalorder %s27, 1
    %p374 = por %p372, %p373
    %p375 = scmp.ne.s32.totalorder %s366, %s367
    %p376 = scmp.eq.s32.totalorder %s27, 0
    %p377 = por %p375, %p376
    %p378 = scmp.ne.s32.totalorder %s366, %s367
    %p379 = scmp.eq.s32.totalorder %s28, 1
    %p380 = por %p378, %p379
    %p382 = scmp.ne.s32.totalorder %s367, %s381
    %p383 = scmp.eq.s32.totalorder %s28, 0
    %p384 = por %p382, %p383
    %s385 = ssub.s32 %s29, %s41
    %s386 = ssub.s32 %s30, %s37
    %s387 = sor.u32 %s385, %s386
    %p388 = scmp.eq.s32.totalorder %s387, 0
    %s390 = sadd.s32 %s389, 1
    %s391 = scalar_select %p388, %s389, %s390
    %p394 = pneg %p388
    %p395 = scmp.eq.s32.totalorder %s22, 1
    %p396 = por %p394, %p395
    %p397 = scmp.ne.s32.totalorder %s389, %s392
    %p398 = scmp.eq.s32.totalorder %s22, 0
    %p399 = por %p397, %p398
    %p400 = scmp.ne.s32.totalorder %s389, %s392
    %p401 = scmp.eq.s32.totalorder %s27, 1
    %p402 = por %p400, %p401
    %p403 = scmp.ne.s32.totalorder %s392, %s393
    %p404 = scmp.eq.s32.totalorder %s27, 0
    %p405 = por %p403, %p404
    %p406 = scmp.ne.s32.totalorder %s392, %s393
    %p407 = scmp.eq.s32.totalorder %s28, 1
    %p408 = por %p406, %p407
    %p410 = scmp.ne.s32.totalorder %s393, %s409
    %p411 = scmp.eq.s32.totalorder %s28, 0
    %p412 = por %p410, %p411
    %p413 = scmp.le.s32.totalorder 1, %s22
    %p414 = scmp.lt.s32.totalorder %s22, 3
    %p415 = pnand %p413, %p414
    %p416 = pneg %p415
    // Predicated region
    $region9: #{postnet_forward.1} parent=5 // pred_check
      _
    $region10: #{postnet_forward.1} parent=5 // pred_check_branch
      %418 = sbr.rel (%p415) target = $region12
    $region11: #{postnet_forward.1} parent=5 // pred_region
      %s419 = ssub.s32 %s22, 1
      // Predicated region
      $region13: #{postnet_forward.1} parent=11 // pred_check
        %p420 = pneg %p83
      $region14: #{postnet_forward.1} parent=11 // pred_check_branch
        %422 = sbr.rel (%p420) target = $region16
      $region15: #{postnet_forward.1} parent=11 // pred_region
        _
      $region16: #{postnet_forward.1} parent=11 // pred_fallthru
        _
      // Predicated region
      $region17: #{postnet_forward.1} parent=11 // pred_check
        %p423 = pneg %p104
      $region18: #{postnet_forward.1} parent=11 // pred_check_branch
        %425 = sbr.rel (%p423) target = $region20
      $region19: #{postnet_forward.1} parent=11 // pred_region
        _
      $region20: #{postnet_forward.1} parent=11 // pred_fallthru
        _
      // Predicated region
      $region21: #{postnet_forward.1} parent=11 // pred_check
        %p426 = pneg %p125
      $region22: #{postnet_forward.1} parent=11 // pred_check_branch
        %428 = sbr.rel (%p426) target = $region24
      $region23: #{postnet_forward.1} parent=11 // pred_region
        _
      $region24: #{postnet_forward.1} parent=11 // pred_fallthru
        _
      // Predicated region
      $region25: #{postnet_forward.1} parent=11 // pred_check
        %p429 = pneg %p146
      $region26: #{postnet_forward.1} parent=11 // pred_check_branch
        %431 = sbr.rel (%p429) target = $region28
      $region27: #{postnet_forward.1} parent=11 // pred_region
        _
      $region28: #{postnet_forward.1} parent=11 // pred_fallthru
        _
      // Predicated region
      $region29: #{postnet_forward.1} parent=11 // pred_check
        %p432 = pneg %p167
      $region30: #{postnet_forward.1} parent=11 // pred_check_branch
        %434 = sbr.rel (%p432) target = $region32
      $region31: #{postnet_forward.1} parent=11 // pred_region
        _
      $region32: #{postnet_forward.1} parent=11 // pred_fallthru
        _
      // Predicated region
      $region33: #{postnet_forward.1} parent=11 // pred_check
        %p435 = pneg %p188
      $region34: #{postnet_forward.1} parent=11 // pred_check_branch
        %437 = sbr.rel (%p435) target = $region36
      $region35: #{postnet_forward.1} parent=11 // pred_region
        _
      $region36: #{postnet_forward.1} parent=11 // pred_fallthru
        _
      // Predicated region
      $region37: #{postnet_forward.1} parent=11 // pred_check
        %p438 = pneg %p209
      $region38: #{postnet_forward.1} parent=11 // pred_check_branch
        %440 = sbr.rel (%p438) target = $region40
      $region39: #{postnet_forward.1} parent=11 // pred_region
        _
      $region40: #{postnet_forward.1} parent=11 // pred_fallthru
        _
      // Predicated region
      $region41: #{postnet_forward.1} parent=11 // pred_check
        %p441 = pneg %p230
      $region42: #{postnet_forward.1} parent=11 // pred_check_branch
        %443 = sbr.rel (%p441) target = $region44
      $region43: #{postnet_forward.1} parent=11 // pred_region
        _
      $region44: #{postnet_forward.1} parent=11 // pred_fallthru
        _
      // Predicated region
      $region45: #{postnet_forward.1} parent=11 // pred_check
        %p444 = pneg %p251
      $region46: #{postnet_forward.1} parent=11 // pred_check_branch
        %446 = sbr.rel (%p444) target = $region48
      $region47: #{postnet_forward.1} parent=11 // pred_region
        _
      $region48: #{postnet_forward.1} parent=11 // pred_fallthru
        _
      // Predicated region
      $region49: #{postnet_forward.1} parent=11 // pred_check
        %p447 = pneg %p272
      $region50: #{postnet_forward.1} parent=11 // pred_check_branch
        %449 = sbr.rel (%p447) target = $region52
      $region51: #{postnet_forward.1} parent=11 // pred_region
        _
      $region52: #{postnet_forward.1} parent=11 // pred_fallthru
        _
      // Predicated region
      $region53: #{postnet_forward.1} parent=11 // pred_check
        %p450 = pneg %p293
      $region54: #{postnet_forward.1} parent=11 // pred_check_branch
        %452 = sbr.rel (%p450) target = $region56
      $region55: #{postnet_forward.1} parent=11 // pred_region
        _
      $region56: #{postnet_forward.1} parent=11 // pred_fallthru
        _
      // Predicated region
      $region57: #{postnet_forward.1} parent=11 // pred_check
        %p453 = pneg %p314
      $region58: #{postnet_forward.1} parent=11 // pred_check_branch
        %455 = sbr.rel (%p453) target = $region60
      $region59: #{postnet_forward.1} parent=11 // pred_region
        _
      $region60: #{postnet_forward.1} parent=11 // pred_fallthru
        _
      // Predicated region
      $region61: #{postnet_forward.1} parent=11 // pred_check
        %p456 = pneg %p335
      $region62: #{postnet_forward.1} parent=11 // pred_check_branch
        %458 = sbr.rel (%p456) target = $region64
      $region63: #{postnet_forward.1} parent=11 // pred_region
        _
      $region64: #{postnet_forward.1} parent=11 // pred_fallthru
        _
      // Predicated region
      $region65: #{postnet_forward.1} parent=11 // pred_check
        %p459 = pneg %p356
      $region66: #{postnet_forward.1} parent=11 // pred_check_branch
        %461 = sbr.rel (%p459) target = $region68
      $region67: #{postnet_forward.1} parent=11 // pred_region
        _
      $region68: #{postnet_forward.1} parent=11 // pred_fallthru
        _
      // Predicated region
      $region69: #{postnet_forward.1} parent=11 // pred_check
        %p462 = pneg %p377
      $region70: #{postnet_forward.1} parent=11 // pred_check_branch
        %464 = sbr.rel (%p462) target = $region72
      $region71: #{postnet_forward.1} parent=11 // pred_region
        _
      $region72: #{postnet_forward.1} parent=11 // pred_fallthru
        _
    $region12: #{postnet_forward.1} parent=5 // pred_fallthru
      _
    %p465 = scmp.lt.s32.totalorder %s22, 2
    // Predicated region
    $region73: #{postnet_forward.1} parent=5 // pred_check
      %p466 = pneg %p465
    $region74: #{postnet_forward.1} parent=5 // pred_check_branch
      %468 = sbr.rel (%p466) target = $region76
    $region75: #{postnet_forward.1} parent=5 // pred_region
      // Predicated region
      $region77: #{postnet_forward.1} parent=75 // pred_check
        %p469 = pneg %p56
      $region78: #{postnet_forward.1} parent=75 // pred_check_branch
        %471 = sbr.rel (%p469) target = $region80
      $region79: #{postnet_forward.1} parent=75 // pred_region
        %p472 = scmp.lt.s32.totalorder %s29, 1
        %s473 = scalar_select %p472, %s29, 1
        %p474 = scmp.lt.s32.totalorder %s30, 0
        %s475 = scalar_select %p474, %s30, 0
        %s476 = smul.addr %s475, 5
        %s477 = smul.addr %s473, 5
        %s478 = sadd.s32 %s476, %s477
        %s479 = smul.addr %s478, 4
        %s480 = scalar_lea.vmem %s0, %s479
      $region80: #{postnet_forward.1} parent=75 // pred_fallthru
        _
    $region76: #{postnet_forward.1} parent=5 // pred_fallthru
      _
    %p481 = scmp.le.s32.totalorder 1, %s22
    %p482 = scmp.lt.s32.totalorder %s22, 3
    %p483 = pnand %p481, %p482
    %p484 = pneg %p483
    // Predicated region
    $region81: #{postnet_forward.1} parent=5 // pred_check
      _
    $region82: #{postnet_forward.1} parent=5 // pred_check_branch
      %486 = sbr.rel (%p483) target = $region84
    $region83: #{postnet_forward.1} parent=5 // pred_region
      %s487 = ssub.s32 %s22, 1
      %p488 = scmp.lt.s32.totalorder %s31, 1
      %s489 = scalar_select %p488, %s31, 1
      %p490 = scmp.lt.s32.totalorder %s32, 0
      %s491 = scalar_select %p490, %s32, 0
      %s492 = smul.addr %s491, 5
      %s493 = smul.addr %s489, 5
      %s494 = sadd.s32 %s492, %s493
      %s495 = smul.addr %s494, 4
      %s496 = scalar_lea.vmem %s0, %s495
      %p497 = pneg %p62
      %p498 = pneg %p59
      %p499 = pneg %p83
      %p500 = pneg %p80
      %p501 = pneg %p104
      %p502 = pneg %p101
      %p503 = pneg %p125
      %p504 = pneg %p122
      %p505 = pneg %p146
      %p506 = pneg %p143
      %p507 = pneg %p167
      %p508 = pneg %p164
      %p509 = pneg %p188
      %p510 = pneg %p185
      %p511 = pneg %p209
      %p512 = pneg %p206
      %p513 = pneg %p230
      %p514 = pneg %p227
      %p515 = pneg %p251
      %p516 = pneg %p248
      %p517 = pneg %p272
      %p518 = pneg %p269
      %p519 = pneg %p293
      %p520 = pneg %p290
      %p521 = pneg %p314
      %p522 = pneg %p311
      %p523 = pneg %p335
      %p524 = pneg %p332
      %p525 = pneg %p356
      %p526 = pneg %p353
      %p527 = pneg %p377
      %p528 = pneg %p374
      %p529 = pneg %p405
      %p530 = pneg %p402
      %s531 = smul.u32 2, %s32
      %p532 = scmp.lt.s32.totalorder %s31, 1
      %s533 = scalar_select %p532, %s31, 1
      %p534 = scmp.lt.s32.totalorder %s531, 1
      %s535 = scalar_select %p534, %s531, 1
      %s536 = smul.addr %s533, 2
      %s537 = sadd.s32 %s535, %s536
      %s538 = smul.addr %s537, 8
      %s539 = scalar_lea.vmem %s16, %s538
      %p540 = scmp.lt.s32.totalorder %s31, 1
      %s541 = scalar_select %p540, %s31, 1
      %p542 = scmp.lt.s32.totalorder %s32, 0
      %s543 = scalar_select %p542, %s32, 0
      %s544 = smul.addr %s543, 5
      %s545 = smul.addr %s541, 5
      %s546 = sadd.s32 %s544, %s545
      %s547 = smul.addr %s546, 4
      %s548 = scalar_lea.vmem %s0, %s547
      %s549 = smul.u32 2, %s32
      %p550 = scmp.lt.s32.totalorder %s31, 1
      %s551 = scalar_select %p550, %s31, 1
      %p552 = scmp.lt.s32.totalorder %s549, 1
      %s553 = scalar_select %p552, %s549, 1
      %s554 = smul.addr %s551, 2
      %s555 = sadd.s32 %s553, %s554
      %s556 = smul.addr %s555, 8
      %s557 = scalar_lea.vmem %s16, %s556
      %s558 = smul.u32 2, %s32
      %s559 = smul.u32 %s32, 16
      %v560 = vld [vmem:[%s548] sm:$0xf]
      %v561 = vld [vmem:[%s548 + $0x4] sm:$0xf]
      %v562 = vld [vmem:[%s548 + $0x8] sm:$0xf]
      %v563 = vld [vmem:[%s548 + $0xc] sm:$0xf]
      %v564 = vld [vmem:[%s548 + $0x10] sm:$0x3]
      %v569 = vunpack.c.l.b16 %v560
      %v570 = vunpack.c.l.b16 %v561
      %v571 = vunpack.c.l.b16 %v562
      %v572 = vunpack.c.l.b16 %v563
      %v573 = vpack.c.b16 %v570, %v569
      %v574 = vpack.c.b16 %v572, %v571
      %v578 = vunpack.c.l.b16 %v564
      %v579 = vpack.c.b16 %v578, %v578
      %vm580 = vsmask.f32 7424
      %v582 = vshrl.u32 %v573, 16
      %v584 = vshll.u32 %v573, 16
      %v586 = vrot.slane %v584, 1
      %v587 = vor.u32 %v582, %v586
      %v589 = vshll.u32 %v574, 16
      %v591 = vrot.slane %v589, 1
      %v592 = vsel %vm580, %v587, %v591
      %v593 = vshrl.u32 %v574, 16
      %v595 = vor.u32 %v593, %v591
      %v597 = vshll.u32 %v579, 16
      %v599 = vrot.slane %v597, 1
      %v600 = vsel %vm580, %v595, %v599
      %vm603 = vcmask 1046528
      %v604 = vrot.slane %v573, 1
      %v605 = vrot.slane %v574, 1
      %v606 = vsel %vm603, %v604, %v605
      %v607 = vrot.slane %v579, 1
      %v608 = vsel %vm603, %v605, %v607
      %vm611 = vsmask.f32 6400
      %v612 = vrot.slane %v582, 1
      %v613 = vrot.slane %v584, 2
      %v614 = vor.u32 %v612, %v613
      %v615 = vrot.slane %v593, 1
      %v616 = vrot.slane %v589, 2
      %v617 = vor.u32 %v615, %v616
      %v618 = vsel %vm611, %v614, %v617
      %v619 = vshrl.u32 %v579, 16
      %v621 = vrot.slane %v619, 1
      %v622 = vrot.slane %v597, 2
      %v623 = vor.u32 %v621, %v622
      %v624 = vsel %vm611, %v617, %v623
      %vm627 = vcmask 1045504
      %v628 = vrot.slane %v573, 2
      %v629 = vrot.slane %v574, 2
      %v630 = vsel %vm627, %v628, %v629
      %v631 = vrot.slane %v579, 2
      %v632 = vsel %vm627, %v629, %v631
      %v635 = vld [vmem:[%s1] sm:$0xf]
      %v636 = vld [vmem:[%s1 + $0x4] sm:$0xf]
      %v637 = vld [vmem:[%s1 + $0x8] sm:$0xf]
      %v638 = vld [vmem:[%s1 + $0xc] sm:$0xf]
      %v639 = vld [vmem:[%s1 + $0x10] sm:$0xf]
      %v640 = vld [vmem:[%s1 + $0x14] sm:$0xf]
      %v641 = vld [vmem:[%s1 + $0x18] sm:$0xf]
      %v642 = vld [vmem:[%s1 + $0x1c] sm:$0xf]
      %v643 = vld [vmem:[%s1 + $0x20] sm:$0xf]
      %v644 = vld [vmem:[%s1 + $0x24] sm:$0xf]
      %v645 = vld [vmem:[%s1 + $0x28] sm:$0xf]
      %v646 = vld [vmem:[%s1 + $0x2c] sm:$0xf]
      %v647 = vld [vmem:[%s1 + $0x30] sm:$0xf]
      %v648 = vld [vmem:[%s1 + $0x34] sm:$0xf]
      %v649 = vld [vmem:[%s1 + $0x38] sm:$0xf]
      %v650 = vld [vmem:[%s1 + $0x3c] sm:$0xf]
      %v651 = vld [vmem:[%s1 + $0x40] sm:$0xf]
      %v652 = vld [vmem:[%s1 + $0x44] sm:$0xf]
      %v653 = vld [vmem:[%s1 + $0x48] sm:$0xf]
      %v654 = vld [vmem:[%s1 + $0x4c] sm:$0xf]
      %v655 = vld [vmem:[%s1 + $0x50] sm:$0xf]
      %v656 = vld [vmem:[%s1 + $0x54] sm:$0xf]
      %v657 = vld [vmem:[%s1 + $0x58] sm:$0xf]
      %v658 = vld [vmem:[%s1 + $0x5c] sm:$0xf]
      %v659 = vld [vmem:[%s1 + $0x60] sm:$0xf]
      %v660 = vld [vmem:[%s1 + $0x64] sm:$0xf]
      %v661 = vld [vmem:[%s1 + $0x68] sm:$0xf]
      %v662 = vld [vmem:[%s1 + $0x6c] sm:$0xf]
      %v663 = vld [vmem:[%s1 + $0x70] sm:$0xf]
      %v664 = vld [vmem:[%s1 + $0x74] sm:$0xf]
      %v665 = vld [vmem:[%s1 + $0x78] sm:$0xf]
      %v666 = vld [vmem:[%s1 + $0x7c] sm:$0xf]
      %v667 = vld [vmem:[%s1 + $0x80] sm:$0xf]
      %v668 = vld [vmem:[%s1 + $0x84] sm:$0xf]
      %v669 = vld [vmem:[%s1 + $0x88] sm:$0xf]
      %v670 = vld [vmem:[%s1 + $0x8c] sm:$0xf]
      %v671 = vld [vmem:[%s1 + $0x90] sm:$0xf]
      %v672 = vld [vmem:[%s1 + $0x94] sm:$0xf]
      %v673 = vld [vmem:[%s1 + $0x98] sm:$0xf]
      %v674 = vld [vmem:[%s1 + $0x9c] sm:$0xf]
      %v675 = vld [vmem:[%s1 + $0xa0] sm:$0xf]
      %v676 = vld [vmem:[%s1 + $0xa4] sm:$0xf]
      %v677 = vld [vmem:[%s1 + $0xa8] sm:$0xf]
      %v678 = vld [vmem:[%s1 + $0xac] sm:$0xf]
      %v679 = vld [vmem:[%s1 + $0xb0] sm:$0xf]
      %v680 = vld [vmem:[%s1 + $0xb4] sm:$0xf]
      %v681 = vld [vmem:[%s1 + $0xb8] sm:$0xf]
      %v682 = vld [vmem:[%s1 + $0xbc] sm:$0xf]
      %v683 = vld [vmem:[%s1 + $0xc0] sm:$0xf]
      %v684 = vld [vmem:[%s1 + $0xc4] sm:$0xf]
      %v685 = vld [vmem:[%s1 + $0xc8] sm:$0xf]
      %v686 = vld [vmem:[%s1 + $0xcc] sm:$0xf]
      %v687 = vld [vmem:[%s1 + $0xd0] sm:$0xf]
      %v688 = vld [vmem:[%s1 + $0xd4] sm:$0xf]
      %v689 = vld [vmem:[%s1 + $0xd8] sm:$0xf]
      %v690 = vld [vmem:[%s1 + $0xdc] sm:$0xf]
      %v691 = vld [vmem:[%s1 + $0xe0] sm:$0xf]
      %v692 = vld [vmem:[%s1 + $0xe4] sm:$0xf]
      %v693 = vld [vmem:[%s1 + $0xe8] sm:$0xf]
      %v694 = vld [vmem:[%s1 + $0xec] sm:$0xf]
      %v695 = vld [vmem:[%s1 + $0xf0] sm:$0xf]
      %v696 = vld [vmem:[%s1 + $0xf4] sm:$0xf]
      %v697 = vld [vmem:[%s1 + $0xf8] sm:$0xf]
      %v698 = vld [vmem:[%s1 + $0xfc] sm:$0xf]
      %v699 = vld [vmem:[%s1 + $0x100] sm:$0xf]
      %v700 = vld [vmem:[%s1 + $0x104] sm:$0xf]
      %v701 = vld [vmem:[%s1 + $0x108] sm:$0xf]
      %v702 = vld [vmem:[%s1 + $0x10c] sm:$0xf]
      %v703 = vld [vmem:[%s1 + $0x110] sm:$0xf]
      %v704 = vld [vmem:[%s1 + $0x114] sm:$0xf]
      %v705 = vld [vmem:[%s1 + $0x118] sm:$0xf]
      %v706 = vld [vmem:[%s1 + $0x11c] sm:$0xf]
      %v707 = vld [vmem:[%s1 + $0x120] sm:$0xf]
      %v708 = vld [vmem:[%s1 + $0x124] sm:$0xf]
      %v709 = vld [vmem:[%s1 + $0x128] sm:$0xf]
      %v710 = vld [vmem:[%s1 + $0x12c] sm:$0xf]
      %v711 = vld [vmem:[%s1 + $0x130] sm:$0xf]
      %v712 = vld [vmem:[%s1 + $0x134] sm:$0xf]
      %v713 = vld [vmem:[%s1 + $0x138] sm:$0xf]
      %v714 = vld [vmem:[%s1 + $0x13c] sm:$0xf]
      %v795 = vunpack.c.l.b16 %v635
      %v796 = vunpack.c.l.b16 %v636
      %v797 = vunpack.c.l.b16 %v637
      %v798 = vunpack.c.l.b16 %v638
      %v799 = vunpack.c.l.b16 %v639
      %v800 = vunpack.c.l.b16 %v640
      %v801 = vunpack.c.l.b16 %v641
      %v802 = vunpack.c.l.b16 %v642
      %v803 = vunpack.c.l.b16 %v643
      %v804 = vunpack.c.l.b16 %v644
      %v805 = vunpack.c.l.b16 %v645
      %v806 = vunpack.c.l.b16 %v646
      %v807 = vunpack.c.l.b16 %v647
      %v808 = vunpack.c.l.b16 %v648
      %v809 = vunpack.c.l.b16 %v649
      %v810 = vunpack.c.l.b16 %v650
      %v811 = vunpack.c.l.b16 %v651
      %v812 = vunpack.c.l.b16 %v652
      %v813 = vunpack.c.l.b16 %v653
      %v814 = vunpack.c.l.b16 %v654
      %v815 = vunpack.c.l.b16 %v655
      %v816 = vunpack.c.l.b16 %v656
      %v817 = vunpack.c.l.b16 %v657
      %v818 = vunpack.c.l.b16 %v658
      %v819 = vunpack.c.l.b16 %v659
      %v820 = vunpack.c.l.b16 %v660
      %v821 = vunpack.c.l.b16 %v661
      %v822 = vunpack.c.l.b16 %v662
      %v823 = vunpack.c.l.b16 %v663
      %v824 = vunpack.c.l.b16 %v664
      %v825 = vunpack.c.l.b16 %v665
      %v826 = vunpack.c.l.b16 %v666
      %v827 = vunpack.c.l.b16 %v667
      %v828 = vunpack.c.l.b16 %v668
      %v829 = vunpack.c.l.b16 %v669
      %v830 = vunpack.c.l.b16 %v670
      %v831 = vunpack.c.l.b16 %v671
      %v832 = vunpack.c.l.b16 %v672
      %v833 = vunpack.c.l.b16 %v673
      %v834 = vunpack.c.l.b16 %v674
      %v835 = vunpack.c.l.b16 %v675
      %v836 = vunpack.c.l.b16 %v676
      %v837 = vunpack.c.l.b16 %v677
      %v838 = vunpack.c.l.b16 %v678
      %v839 = vunpack.c.l.b16 %v679
      %v840 = vunpack.c.l.b16 %v680
      %v841 = vunpack.c.l.b16 %v681
      %v842 = vunpack.c.l.b16 %v682
      %v843 = vunpack.c.l.b16 %v683
      %v844 = vunpack.c.l.b16 %v684
      %v845 = vunpack.c.l.b16 %v685
      %v846 = vunpack.c.l.b16 %v686
      %v847 = vunpack.c.l.b16 %v687
      %v848 = vunpack.c.l.b16 %v688
      %v849 = vunpack.c.l.b16 %v689
      %v850 = vunpack.c.l.b16 %v690
      %v851 = vunpack.c.l.b16 %v691
      %v852 = vunpack.c.l.b16 %v692
      %v853 = vunpack.c.l.b16 %v693
      %v854 = vunpack.c.l.b16 %v694
      %v855 = vunpack.c.l.b16 %v695
      %v856 = vunpack.c.l.b16 %v696
      %v857 = vunpack.c.l.b16 %v697
      %v858 = vunpack.c.l.b16 %v698
      %v859 = vunpack.c.l.b16 %v699
      %v860 = vunpack.c.l.b16 %v700
      %v861 = vunpack.c.l.b16 %v701
      %v862 = vunpack.c.l.b16 %v702
      %v863 = vunpack.c.l.b16 %v703
      %v864 = vunpack.c.l.b16 %v704
      %v865 = vunpack.c.l.b16 %v705
      %v866 = vunpack.c.l.b16 %v706
      %v867 = vunpack.c.l.b16 %v707
      %v868 = vunpack.c.l.b16 %v708
      %v869 = vunpack.c.l.b16 %v709
      %v870 = vunpack.c.l.b16 %v710
      %v871 = vunpack.c.l.b16 %v711
      %v872 = vunpack.c.l.b16 %v712
      %v873 = vunpack.c.l.b16 %v713
      %v874 = vunpack.c.l.b16 %v714
      %v875 = vpack.c.b16 %v796, %v795
      %v876 = vpack.c.b16 %v798, %v797
      %v877 = vpack.c.b16 %v800, %v799
      %v878 = vpack.c.b16 %v802, %v801
      %v879 = vpack.c.b16 %v804, %v803
      %v880 = vpack.c.b16 %v806, %v805
      %v881 = vpack.c.b16 %v808, %v807
      %v882 = vpack.c.b16 %v810, %v809
      %v883 = vpack.c.b16 %v812, %v811
      %v884 = vpack.c.b16 %v814, %v813
      %v885 = vpack.c.b16 %v816, %v815
      %v886 = vpack.c.b16 %v818, %v817
      %v887 = vpack.c.b16 %v820, %v819
      %v888 = vpack.c.b16 %v822, %v821
      %v889 = vpack.c.b16 %v824, %v823
      %v890 = vpack.c.b16 %v826, %v825
      %v891 = vpack.c.b16 %v828, %v827
      %v892 = vpack.c.b16 %v830, %v829
      %v893 = vpack.c.b16 %v832, %v831
      %v894 = vpack.c.b16 %v834, %v833
      %v895 = vpack.c.b16 %v836, %v835
      %v896 = vpack.c.b16 %v838, %v837
      %v897 = vpack.c.b16 %v840, %v839
      %v898 = vpack.c.b16 %v842, %v841
      %v899 = vpack.c.b16 %v844, %v843
      %v900 = vpack.c.b16 %v846, %v845
      %v901 = vpack.c.b16 %v848, %v847
      %v902 = vpack.c.b16 %v850, %v849
      %v903 = vpack.c.b16 %v852, %v851
      %v904 = vpack.c.b16 %v854, %v853
      %v905 = vpack.c.b16 %v856, %v855
      %v906 = vpack.c.b16 %v858, %v857
      %v907 = vpack.c.b16 %v860, %v859
      %v908 = vpack.c.b16 %v862, %v861
      %v909 = vpack.c.b16 %v864, %v863
      %v910 = vpack.c.b16 %v866, %v865
      %v911 = vpack.c.b16 %v868, %v867
      %v912 = vpack.c.b16 %v870, %v869
      %v913 = vpack.c.b16 %v872, %v871
      %v914 = vpack.c.b16 %v874, %v873
      %955 = vmatpush.bf16.msra.mxu0 %v882
      %956 = vmatpush.bf16.msra.mxu0 %v881
      %957 = vmatpush.bf16.msra.mxu0 %v880
      %958 = vmatpush.bf16.msra.mxu0 %v879
      %959 = vmatpush.bf16.msra.mxu0 %v878
      %960 = vmatpush.bf16.msra.mxu0 %v877
      %961 = vmatpush.bf16.msra.mxu0 %v876
      %962 = vmatpush.bf16.msra.mxu0 %v875
      %963 = vmatmul.bf16.gmra.mxu0 %v573
      %v964 = vpop.f32.mrf.mxu0
      %v965 = vadd.f32 0.0, %v964
      %v966 = vpop.f32.mrf.mxu0
      %v967 = vadd.f32 0.0, %v966
      %968 = vmatmul.bf16.gmra.mxu0 %v574
      %v969 = vpop.f32.mrf.mxu0
      %v970 = vadd.f32 0.0, %v969
      %v971 = vpop.f32.mrf.mxu0
      %v972 = vadd.f32 0.0, %v971
      %973 = vdwg.mxu0
      %974 = vmatpush.bf16.msra.mxu0 %v890
      %975 = vmatpush.bf16.msra.mxu0 %v889
      %976 = vmatpush.bf16.msra.mxu0 %v888
      %977 = vmatpush.bf16.msra.mxu0 %v887
      %978 = vmatpush.bf16.msra.mxu0 %v886
      %979 = vmatpush.bf16.msra.mxu0 %v885
      %980 = vmatpush.bf16.msra.mxu0 %v884
      %981 = vmatpush.bf16.msra.mxu0 %v883
      %982 = vmatmul.bf16.gmra.mxu0 %v592
      %v983 = vpop.f32.mrf.mxu0
      %v984 = vadd.f32 %v965, %v983
      %v985 = vpop.f32.mrf.mxu0
      %v986 = vadd.f32 %v967, %v985
      %987 = vmatmul.bf16.gmra.mxu0 %v600
      %v988 = vpop.f32.mrf.mxu0
      %v989 = vadd.f32 %v970, %v988
      %v990 = vpop.f32.mrf.mxu0
      %v991 = vadd.f32 %v972, %v990
      %992 = vdwg.mxu0
      %993 = vmatpush.bf16.msra.mxu0 %v898
      %994 = vmatpush.bf16.msra.mxu0 %v897
      %995 = vmatpush.bf16.msra.mxu0 %v896
      %996 = vmatpush.bf16.msra.mxu0 %v895
      %997 = vmatpush.bf16.msra.mxu0 %v894
      %998 = vmatpush.bf16.msra.mxu0 %v893
      %999 = vmatpush.bf16.msra.mxu0 %v892
      %1000 = vmatpush.bf16.msra.mxu0 %v891
      %1001 = vmatmul.bf16.gmra.mxu0 %v606
      %v1002 = vpop.f32.mrf.mxu0
      %v1003 = vadd.f32 %v984, %v1002
      %v1004 = vpop.f32.mrf.mxu0
      %v1005 = vadd.f32 %v986, %v1004
      %1006 = vmatmul.bf16.gmra.mxu0 %v608
      %v1007 = vpop.f32.mrf.mxu0
      %v1008 = vadd.f32 %v989, %v1007
      %v1009 = vpop.f32.mrf.mxu0
      %v1010 = vadd.f32 %v991, %v1009
      %1011 = vdwg.mxu0
      %1012 = vmatpush.bf16.msra.mxu0 %v906
      %1013 = vmatpush.bf16.msra.mxu0 %v905
      %1014 = vmatpush.bf16.msra.mxu0 %v904
      %1015 = vmatpush.bf16.msra.mxu0 %v903
      %1016 = vmatpush.bf16.msra.mxu0 %v902
      %1017 = vmatpush.bf16.msra.mxu0 %v901
      %1018 = vmatpush.bf16.msra.mxu0 %v900
      %1019 = vmatpush.bf16.msra.mxu0 %v899
      %1020 = vmatmul.bf16.gmra.mxu0 %v618
      %v1021 = vpop.f32.mrf.mxu0
      %v1022 = vadd.f32 %v1003, %v1021
      %v1023 = vpop.f32.mrf.mxu0
      %v1024 = vadd.f32 %v1005, %v1023
      %1025 = vmatmul.bf16.gmra.mxu0 %v624
      %v1026 = vpop.f32.mrf.mxu0
      %v1027 = vadd.f32 %v1008, %v1026
      %v1028 = vpop.f32.mrf.mxu0
      %v1029 = vadd.f32 %v1010, %v1028
      %1030 = vdwg.mxu0
      %1031 = vmatpush.bf16.msra.mxu0 %v914
      %1032 = vmatpush.bf16.msra.mxu0 %v913
      %1033 = vmatpush.bf16.msra.mxu0 %v912
      %1034 = vmatpush.bf16.msra.mxu0 %v911
      %1035 = vmatpush.bf16.msra.mxu0 %v910
      %1036 = vmatpush.bf16.msra.mxu0 %v909
      %1037 = vmatpush.bf16.msra.mxu0 %v908
      %1038 = vmatpush.bf16.msra.mxu0 %v907
      %1039 = vmatmul.bf16.gmra.mxu0 %v630
      %v1040 = vpop.f32.mrf.mxu0
      %v1041 = vadd.f32 %v1022, %v1040
      %v1042 = vpop.f32.mrf.mxu0
      %v1043 = vadd.f32 %v1024, %v1042
      %1044 = vmatmul.bf16.gmra.mxu0 %v632
      %v1045 = vpop.f32.mrf.mxu0
      %v1046 = vadd.f32 %v1027, %v1045
      %v1047 = vpop.f32.mrf.mxu0
      %v1048 = vadd.f32 %v1029, %v1047
      %1049 = vdwg.mxu0
      %v1050 = vld [vmem:[%s2] sm:$0x1]
      %v1052 = vperm.slane %v1050, 0
      %v1054 = vmul.f32 %v1041, %v1052
      %v1055 = vmul.f32 %v1043, %v1052
      %v1056 = vmul.f32 %v1046, %v1052
      %v1057 = vmul.f32 %v1048, %v1052
      %v1058 = vld [vmem:[%s3] sm:$0x1]
      %v1060 = vperm.slane %v1058, 0
      %v1062 = vadd.f32 %v1054, %v1060
      %v1063 = vadd.f32 %v1055, %v1060
      %v1064 = vadd.f32 %v1056, %v1060
      %v1065 = vadd.f32 %v1057, %v1060
      %v1066 = vtanh.pop %v1062
      %v1067 = vtanh.pop %v1063
      %v1068 = vtanh.pop %v1064
      %v1069 = vtanh.pop %v1065
      %s1070 = sadd.s32 %s559, 4294967288
      %v1071 = vlaneseq
      %v1072 = vshrl.u32 %v1071, 7
      %v1073 = vadd.s32 %v1072, 8
      %v1074 = vadd.s32 %v1072, 16
      %v1075 = vadd.s32 %v1072, 24
      %v1076 = vstv %s1070
      %v1077 = vadd.s32 %v1076, %v1072
      %v1078 = vadd.s32 %v1076, %v1073
      %v1079 = vadd.s32 %v1076, %v1074
      %v1080 = vadd.s32 %v1076, %v1075
      %vm1081 = vcmp.ge.s32.totalorder %v1077, 0
      %vm1082 = vcmp.ge.s32.totalorder %v1078, 0
      %vm1083 = vcmp.ge.s32.totalorder %v1079, 0
      %vm1084 = vcmp.ge.s32.totalorder %v1080, 0
      %vm1085 = vcmp.lt.s32.totalorder %v1077, 16
      %vm1086 = vcmp.lt.s32.totalorder %v1078, 16
      %vm1087 = vcmp.lt.s32.totalorder %v1079, 16
      %vm1088 = vcmp.lt.s32.totalorder %v1080, 16
      %vm1089 = vmand %vm1081, %vm1085
      %vm1090 = vmand %vm1082, %vm1086
      %vm1091 = vmand %vm1083, %vm1087
      %vm1092 = vmand %vm1084, %vm1088
      %v1093 = vsel %vm1089, 1, 0
      %v1094 = vsel %vm1090, 1, 0
      %v1095 = vsel %vm1091, 1, 0
      %v1096 = vsel %vm1092, 1, 0
      %vm1097 = vcmp.eq.s32.totalorder %v1093, 1
      %vm1098 = vcmp.eq.s32.totalorder %v1094, 1
      %vm1099 = vcmp.eq.s32.totalorder %v1095, 1
      %vm1100 = vcmp.eq.s32.totalorder %v1096, 1
      %v1101 = vsel %vm1097, %v1066, 0.0
      %v1102 = vsel %vm1098, %v1067, 0.0
      %v1103 = vsel %vm1099, %v1068, 0.0
      %v1104 = vsel %vm1100, %v1069, 0.0
      %v1105 = vpack.c.bf16 %v1101, %v1101
      %v1106 = vpack.c.bf16 %v1102, %v1102
      %v1107 = vpack.c.bf16 %v1103, %v1103
      %v1108 = vpack.c.bf16 %v1104, %v1104
      %v1113 = vunpack.c.l.b16 %v1105
      %v1114 = vunpack.c.l.b16 %v1106
      %v1115 = vunpack.c.l.b16 %v1107
      %v1116 = vunpack.c.l.b16 %v1108
      %v1117 = vpack.c.b16 %v1114, %v1113
      %v1118 = vpack.c.b16 %v1116, %v1115
      %v1122 = vshrl.u32 %v1117, 16
      %v1124 = vshll.u32 %v1117, 16
      %v1126 = vrot.slane %v1124, 1
      %v1127 = vor.u32 %v1122, %v1126
      %v1129 = vshll.u32 %v1118, 16
      %v1131 = vrot.slane %v1129, 1
      %v1132 = vsel %vm580, %v1127, %v1131
      %v1133 = vshrl.u32 %v1118, 16
      %v1135 = vor.u32 %v1133, %v1131
      %v1138 = vrot.slane %v1117, 1
      %v1139 = vrot.slane %v1118, 1
      %v1140 = vsel %vm603, %v1138, %v1139
      %v1143 = vrot.slane %v1122, 1
      %v1144 = vrot.slane %v1124, 2
      %v1145 = vor.u32 %v1143, %v1144
      %v1146 = vrot.slane %v1133, 1
      %v1147 = vrot.slane %v1129, 2
      %v1148 = vor.u32 %v1146, %v1147
      %v1149 = vsel %vm611, %v1145, %v1148
      %v1152 = vrot.slane %v1117, 2
      %v1153 = vrot.slane %v1118, 2
      %v1154 = vsel %vm627, %v1152, %v1153
      %v1157 = vld [vmem:[%s4] sm:$0xf]
      %v1158 = vld [vmem:[%s4 + $0x4] sm:$0xf]
      %v1159 = vld [vmem:[%s4 + $0x8] sm:$0xf]
      %v1160 = vld [vmem:[%s4 + $0xc] sm:$0xf]
      %v1161 = vld [vmem:[%s4 + $0x10] sm:$0xf]
      %v1162 = vld [vmem:[%s4 + $0x14] sm:$0xf]
      %v1163 = vld [vmem:[%s4 + $0x18] sm:$0xf]
      %v1164 = vld [vmem:[%s4 + $0x1c] sm:$0xf]
      %v1165 = vld [vmem:[%s4 + $0x20] sm:$0xf]
      %v1166 = vld [vmem:[%s4 + $0x24] sm:$0xf]
      %v1167 = vld [vmem:[%s4 + $0x28] sm:$0xf]
      %v1168 = vld [vmem:[%s4 + $0x2c] sm:$0xf]
      %v1169 = vld [vmem:[%s4 + $0x30] sm:$0xf]
      %v1170 = vld [vmem:[%s4 + $0x34] sm:$0xf]
      %v1171 = vld [vmem:[%s4 + $0x38] sm:$0xf]
      %v1172 = vld [vmem:[%s4 + $0x3c] sm:$0xf]
      %v1173 = vld [vmem:[%s4 + $0x40] sm:$0xf]
      %v1174 = vld [vmem:[%s4 + $0x44] sm:$0xf]
      %v1175 = vld [vmem:[%s4 + $0x48] sm:$0xf]
      %v1176 = vld [vmem:[%s4 + $0x4c] sm:$0xf]
      %v1177 = vld [vmem:[%s4 + $0x50] sm:$0xf]
      %v1178 = vld [vmem:[%s4 + $0x54] sm:$0xf]
      %v1179 = vld [vmem:[%s4 + $0x58] sm:$0xf]
      %v1180 = vld [vmem:[%s4 + $0x5c] sm:$0xf]
      %v1181 = vld [vmem:[%s4 + $0x60] sm:$0xf]
      %v1182 = vld [vmem:[%s4 + $0x64] sm:$0xf]
      %v1183 = vld [vmem:[%s4 + $0x68] sm:$0xf]
      %v1184 = vld [vmem:[%s4 + $0x6c] sm:$0xf]
      %v1185 = vld [vmem:[%s4 + $0x70] sm:$0xf]
      %v1186 = vld [vmem:[%s4 + $0x74] sm:$0xf]
      %v1187 = vld [vmem:[%s4 + $0x78] sm:$0xf]
      %v1188 = vld [vmem:[%s4 + $0x7c] sm:$0xf]
      %v1189 = vld [vmem:[%s4 + $0x80] sm:$0xf]
      %v1190 = vld [vmem:[%s4 + $0x84] sm:$0xf]
      %v1191 = vld [vmem:[%s4 + $0x88] sm:$0xf]
      %v1192 = vld [vmem:[%s4 + $0x8c] sm:$0xf]
      %v1193 = vld [vmem:[%s4 + $0x90] sm:$0xf]
      %v1194 = vld [vmem:[%s4 + $0x94] sm:$0xf]
      %v1195 = vld [vmem:[%s4 + $0x98] sm:$0xf]
      %v1196 = vld [vmem:[%s4 + $0x9c] sm:$0xf]
      %v1197 = vld [vmem:[%s4 + $0xa0] sm:$0xf]
      %v1198 = vld [vmem:[%s4 + $0xa4] sm:$0xf]
      %v1199 = vld [vmem:[%s4 + $0xa8] sm:$0xf]
      %v1200 = vld [vmem:[%s4 + $0xac] sm:$0xf]
      %v1201 = vld [vmem:[%s4 + $0xb0] sm:$0xf]
      %v1202 = vld [vmem:[%s4 + $0xb4] sm:$0xf]
      %v1203 = vld [vmem:[%s4 + $0xb8] sm:$0xf]
      %v1204 = vld [vmem:[%s4 + $0xbc] sm:$0xf]
      %v1205 = vld [vmem:[%s4 + $0xc0] sm:$0xf]
      %v1206 = vld [vmem:[%s4 + $0xc4] sm:$0xf]
      %v1207 = vld [vmem:[%s4 + $0xc8] sm:$0xf]
      %v1208 = vld [vmem:[%s4 + $0xcc] sm:$0xf]
      %v1209 = vld [vmem:[%s4 + $0xd0] sm:$0xf]
      %v1210 = vld [vmem:[%s4 + $0xd4] sm:$0xf]
      %v1211 = vld [vmem:[%s4 + $0xd8] sm:$0xf]
      %v1212 = vld [vmem:[%s4 + $0xdc] sm:$0xf]
      %v1213 = vld [vmem:[%s4 + $0xe0] sm:$0xf]
      %v1214 = vld [vmem:[%s4 + $0xe4] sm:$0xf]
      %v1215 = vld [vmem:[%s4 + $0xe8] sm:$0xf]
      %v1216 = vld [vmem:[%s4 + $0xec] sm:$0xf]
      %v1217 = vld [vmem:[%s4 + $0xf0] sm:$0xf]
      %v1218 = vld [vmem:[%s4 + $0xf4] sm:$0xf]
      %v1219 = vld [vmem:[%s4 + $0xf8] sm:$0xf]
      %v1220 = vld [vmem:[%s4 + $0xfc] sm:$0xf]
      %v1221 = vld [vmem:[%s4 + $0x100] sm:$0xf]
      %v1222 = vld [vmem:[%s4 + $0x104] sm:$0xf]
      %v1223 = vld [vmem:[%s4 + $0x108] sm:$0xf]
      %v1224 = vld [vmem:[%s4 + $0x10c] sm:$0xf]
      %v1225 = vld [vmem:[%s4 + $0x110] sm:$0xf]
      %v1226 = vld [vmem:[%s4 + $0x114] sm:$0xf]
      %v1227 = vld [vmem:[%s4 + $0x118] sm:$0xf]
      %v1228 = vld [vmem:[%s4 + $0x11c] sm:$0xf]
      %v1229 = vld [vmem:[%s4 + $0x120] sm:$0xf]
      %v1230 = vld [vmem:[%s4 + $0x124] sm:$0xf]
      %v1231 = vld [vmem:[%s4 + $0x128] sm:$0xf]
      %v1232 = vld [vmem:[%s4 + $0x12c] sm:$0xf]
      %v1233 = vld [vmem:[%s4 + $0x130] sm:$0xf]
      %v1234 = vld [vmem:[%s4 + $0x134] sm:$0xf]
      %v1235 = vld [vmem:[%s4 + $0x138] sm:$0xf]
      %v1236 = vld [vmem:[%s4 + $0x13c] sm:$0xf]
      %v1317 = vunpack.c.l.b16 %v1157
      %v1318 = vunpack.c.l.b16 %v1158
      %v1319 = vunpack.c.l.b16 %v1159
      %v1320 = vunpack.c.l.b16 %v1160
      %v1321 = vunpack.c.l.b16 %v1161
      %v1322 = vunpack.c.l.b16 %v1162
      %v1323 = vunpack.c.l.b16 %v1163
      %v1324 = vunpack.c.l.b16 %v1164
      %v1325 = vunpack.c.l.b16 %v1165
      %v1326 = vunpack.c.l.b16 %v1166
      %v1327 = vunpack.c.l.b16 %v1167
      %v1328 = vunpack.c.l.b16 %v1168
      %v1329 = vunpack.c.l.b16 %v1169
      %v1330 = vunpack.c.l.b16 %v1170
      %v1331 = vunpack.c.l.b16 %v1171
      %v1332 = vunpack.c.l.b16 %v1172
      %v1333 = vunpack.c.l.b16 %v1173
      %v1334 = vunpack.c.l.b16 %v1174
      %v1335 = vunpack.c.l.b16 %v1175
      %v1336 = vunpack.c.l.b16 %v1176
      %v1337 = vunpack.c.l.b16 %v1177
      %v1338 = vunpack.c.l.b16 %v1178
      %v1339 = vunpack.c.l.b16 %v1179
      %v1340 = vunpack.c.l.b16 %v1180
      %v1341 = vunpack.c.l.b16 %v1181
      %v1342 = vunpack.c.l.b16 %v1182
      %v1343 = vunpack.c.l.b16 %v1183
      %v1344 = vunpack.c.l.b16 %v1184
      %v1345 = vunpack.c.l.b16 %v1185
      %v1346 = vunpack.c.l.b16 %v1186
      %v1347 = vunpack.c.l.b16 %v1187
      %v1348 = vunpack.c.l.b16 %v1188
      %v1349 = vunpack.c.l.b16 %v1189
      %v1350 = vunpack.c.l.b16 %v1190
      %v1351 = vunpack.c.l.b16 %v1191
      %v1352 = vunpack.c.l.b16 %v1192
      %v1353 = vunpack.c.l.b16 %v1193
      %v1354 = vunpack.c.l.b16 %v1194
      %v1355 = vunpack.c.l.b16 %v1195
      %v1356 = vunpack.c.l.b16 %v1196
      %v1357 = vunpack.c.l.b16 %v1197
      %v1358 = vunpack.c.l.b16 %v1198
      %v1359 = vunpack.c.l.b16 %v1199
      %v1360 = vunpack.c.l.b16 %v1200
      %v1361 = vunpack.c.l.b16 %v1201
      %v1362 = vunpack.c.l.b16 %v1202
      %v1363 = vunpack.c.l.b16 %v1203
      %v1364 = vunpack.c.l.b16 %v1204
      %v1365 = vunpack.c.l.b16 %v1205
      %v1366 = vunpack.c.l.b16 %v1206
      %v1367 = vunpack.c.l.b16 %v1207
      %v1368 = vunpack.c.l.b16 %v1208
      %v1369 = vunpack.c.l.b16 %v1209
      %v1370 = vunpack.c.l.b16 %v1210
      %v1371 = vunpack.c.l.b16 %v1211
      %v1372 = vunpack.c.l.b16 %v1212
      %v1373 = vunpack.c.l.b16 %v1213
      %v1374 = vunpack.c.l.b16 %v1214
      %v1375 = vunpack.c.l.b16 %v1215
      %v1376 = vunpack.c.l.b16 %v1216
      %v1377 = vunpack.c.l.b16 %v1217
      %v1378 = vunpack.c.l.b16 %v1218
      %v1379 = vunpack.c.l.b16 %v1219
      %v1380 = vunpack.c.l.b16 %v1220
      %v1381 = vunpack.c.l.b16 %v1221
      %v1382 = vunpack.c.l.b16 %v1222
      %v1383 = vunpack.c.l.b16 %v1223
      %v1384 = vunpack.c.l.b16 %v1224
      %v1385 = vunpack.c.l.b16 %v1225
      %v1386 = vunpack.c.l.b16 %v1226
      %v1387 = vunpack.c.l.b16 %v1227
      %v1388 = vunpack.c.l.b16 %v1228
      %v1389 = vunpack.c.l.b16 %v1229
      %v1390 = vunpack.c.l.b16 %v1230
      %v1391 = vunpack.c.l.b16 %v1231
      %v1392 = vunpack.c.l.b16 %v1232
      %v1393 = vunpack.c.l.b16 %v1233
      %v1394 = vunpack.c.l.b16 %v1234
      %v1395 = vunpack.c.l.b16 %v1235
      %v1396 = vunpack.c.l.b16 %v1236
      %v1397 = vpack.c.b16 %v1318, %v1317
      %v1398 = vpack.c.b16 %v1320, %v1319
      %v1399 = vpack.c.b16 %v1322, %v1321
      %v1400 = vpack.c.b16 %v1324, %v1323
      %v1401 = vpack.c.b16 %v1326, %v1325
      %v1402 = vpack.c.b16 %v1328, %v1327
      %v1403 = vpack.c.b16 %v1330, %v1329
      %v1404 = vpack.c.b16 %v1332, %v1331
      %v1405 = vpack.c.b16 %v1334, %v1333
      %v1406 = vpack.c.b16 %v1336, %v1335
      %v1407 = vpack.c.b16 %v1338, %v1337
      %v1408 = vpack.c.b16 %v1340, %v1339
      %v1409 = vpack.c.b16 %v1342, %v1341
      %v1410 = vpack.c.b16 %v1344, %v1343
      %v1411 = vpack.c.b16 %v1346, %v1345
      %v1412 = vpack.c.b16 %v1348, %v1347
      %v1413 = vpack.c.b16 %v1350, %v1349
      %v1414 = vpack.c.b16 %v1352, %v1351
      %v1415 = vpack.c.b16 %v1354, %v1353
      %v1416 = vpack.c.b16 %v1356, %v1355
      %v1417 = vpack.c.b16 %v1358, %v1357
      %v1418 = vpack.c.b16 %v1360, %v1359
      %v1419 = vpack.c.b16 %v1362, %v1361
      %v1420 = vpack.c.b16 %v1364, %v1363
      %v1421 = vpack.c.b16 %v1366, %v1365
      %v1422 = vpack.c.b16 %v1368, %v1367
      %v1423 = vpack.c.b16 %v1370, %v1369
      %v1424 = vpack.c.b16 %v1372, %v1371
      %v1425 = vpack.c.b16 %v1374, %v1373
      %v1426 = vpack.c.b16 %v1376, %v1375
      %v1427 = vpack.c.b16 %v1378, %v1377
      %v1428 = vpack.c.b16 %v1380, %v1379
      %v1429 = vpack.c.b16 %v1382, %v1381
      %v1430 = vpack.c.b16 %v1384, %v1383
      %v1431 = vpack.c.b16 %v1386, %v1385
      %v1432 = vpack.c.b16 %v1388, %v1387
      %v1433 = vpack.c.b16 %v1390, %v1389
      %v1434 = vpack.c.b16 %v1392, %v1391
      %v1435 = vpack.c.b16 %v1394, %v1393
      %v1436 = vpack.c.b16 %v1396, %v1395
      %1477 = vmatpush.bf16.msra.mxu0 %v1404
      %1478 = vmatpush.bf16.msra.mxu0 %v1403
      %1479 = vmatpush.bf16.msra.mxu0 %v1402
      %1480 = vmatpush.bf16.msra.mxu0 %v1401
      %1481 = vmatpush.bf16.msra.mxu0 %v1400
      %1482 = vmatpush.bf16.msra.mxu0 %v1399
      %1483 = vmatpush.bf16.msra.mxu0 %v1398
      %1484 = vmatpush.bf16.msra.mxu0 %v1397
      %1485 = vmatmul.bf16.gmra.mxu0 %v1117
      %v1486 = vpop.f32.mrf.mxu0
      %v1487 = vadd.f32 0.0, %v1486
      %v1488 = vpop.f32.mrf.mxu0
      %v1489 = vadd.f32 0.0, %v1488
      %1490 = vmatmul.bf16.gmra.mxu0 %v1118
      %v1491 = vpop.f32.mrf.mxu0
      %v1492 = vadd.f32 0.0, %v1491
      %v1493 = vpop.f32.mrf.mxu0
      %v1494 = vadd.f32 0.0, %v1493
      %1495 = vdwg.mxu0
      %1496 = vmatpush.bf16.msra.mxu0 %v1412
      %1497 = vmatpush.bf16.msra.mxu0 %v1411
      %1498 = vmatpush.bf16.msra.mxu0 %v1410
      %1499 = vmatpush.bf16.msra.mxu0 %v1409
      %1500 = vmatpush.bf16.msra.mxu0 %v1408
      %1501 = vmatpush.bf16.msra.mxu0 %v1407
      %1502 = vmatpush.bf16.msra.mxu0 %v1406
      %1503 = vmatpush.bf16.msra.mxu0 %v1405
      %1504 = vmatmul.bf16.gmra.mxu0 %v1132
      %v1505 = vpop.f32.mrf.mxu0
      %v1506 = vadd.f32 %v1487, %v1505
      %v1507 = vpop.f32.mrf.mxu0
      %v1508 = vadd.f32 %v1489, %v1507
      %1509 = vmatmul.bf16.gmra.mxu0 %v1135
      %v1510 = vpop.f32.mrf.mxu0
      %v1511 = vadd.f32 %v1492, %v1510
      %v1512 = vpop.f32.mrf.mxu0
      %v1513 = vadd.f32 %v1494, %v1512
      %1514 = vdwg.mxu0
      %1515 = vmatpush.bf16.msra.mxu0 %v1420
      %1516 = vmatpush.bf16.msra.mxu0 %v1419
      %1517 = vmatpush.bf16.msra.mxu0 %v1418
      %1518 = vmatpush.bf16.msra.mxu0 %v1417
      %1519 = vmatpush.bf16.msra.mxu0 %v1416
      %1520 = vmatpush.bf16.msra.mxu0 %v1415
      %1521 = vmatpush.bf16.msra.mxu0 %v1414
      %1522 = vmatpush.bf16.msra.mxu0 %v1413
      %1523 = vmatmul.bf16.gmra.mxu0 %v1140
      %v1524 = vpop.f32.mrf.mxu0
      %v1525 = vadd.f32 %v1506, %v1524
      %v1526 = vpop.f32.mrf.mxu0
      %v1527 = vadd.f32 %v1508, %v1526
      %1528 = vmatmul.bf16.gmra.mxu0 %v1139
      %v1529 = vpop.f32.mrf.mxu0
      %v1530 = vadd.f32 %v1511, %v1529
      %v1531 = vpop.f32.mrf.mxu0
      %v1532 = vadd.f32 %v1513, %v1531
      %1533 = vdwg.mxu0
      %1534 = vmatpush.bf16.msra.mxu0 %v1428
      %1535 = vmatpush.bf16.msra.mxu0 %v1427
      %1536 = vmatpush.bf16.msra.mxu0 %v1426
      %1537 = vmatpush.bf16.msra.mxu0 %v1425
      %1538 = vmatpush.bf16.msra.mxu0 %v1424
      %1539 = vmatpush.bf16.msra.mxu0 %v1423
      %1540 = vmatpush.bf16.msra.mxu0 %v1422
      %1541 = vmatpush.bf16.msra.mxu0 %v1421
      %1542 = vmatmul.bf16.gmra.mxu0 %v1149
      %v1543 = vpop.f32.mrf.mxu0
      %v1544 = vadd.f32 %v1525, %v1543
      %v1545 = vpop.f32.mrf.mxu0
      %v1546 = vadd.f32 %v1527, %v1545
      %1547 = vmatmul.bf16.gmra.mxu0 %v1148
      %v1548 = vpop.f32.mrf.mxu0
      %v1549 = vadd.f32 %v1530, %v1548
      %v1550 = vpop.f32.mrf.mxu0
      %v1551 = vadd.f32 %v1532, %v1550
      %1552 = vdwg.mxu0
      %1553 = vmatpush.bf16.msra.mxu0 %v1436
      %1554 = vmatpush.bf16.msra.mxu0 %v1435
      %1555 = vmatpush.bf16.msra.mxu0 %v1434
      %1556 = vmatpush.bf16.msra.mxu0 %v1433
      %1557 = vmatpush.bf16.msra.mxu0 %v1432
      %1558 = vmatpush.bf16.msra.mxu0 %v1431
      %1559 = vmatpush.bf16.msra.mxu0 %v1430
      %1560 = vmatpush.bf16.msra.mxu0 %v1429
      %1561 = vmatmul.bf16.gmra.mxu0 %v1154
      %v1562 = vpop.f32.mrf.mxu0
      %v1563 = vadd.f32 %v1544, %v1562
      %v1564 = vpop.f32.mrf.mxu0
      %v1565 = vadd.f32 %v1546, %v1564
      %1566 = vmatmul.bf16.gmra.mxu0 %v1153
      %v1567 = vpop.f32.mrf.mxu0
      %v1568 = vadd.f32 %v1549, %v1567
      %v1569 = vpop.f32.mrf.mxu0
      %v1570 = vadd.f32 %v1551, %v1569
      %1571 = vdwg.mxu0
      %v1572 = vld [vmem:[%s5] sm:$0x1]
      %v1574 = vperm.slane %v1572, 0
      %v1576 = vmul.f32 %v1563, %v1574
      %v1577 = vmul.f32 %v1565, %v1574
      %v1578 = vmul.f32 %v1568, %v1574
      %v1579 = vmul.f32 %v1570, %v1574
      %v1580 = vld [vmem:[%s6] sm:$0x1]
      %v1582 = vperm.slane %v1580, 0
      %v1584 = vadd.f32 %v1576, %v1582
      %v1585 = vadd.f32 %v1577, %v1582
      %v1586 = vadd.f32 %v1578, %v1582
      %v1587 = vadd.f32 %v1579, %v1582
      %v1588 = vtanh.pop %v1584
      %v1589 = vtanh.pop %v1585
      %v1590 = vtanh.pop %v1586
      %v1591 = vtanh.pop %v1587
      %s1592 = sadd.s32 %s559, 4294967290
      %v1593 = vstv %s1592
      %v1594 = vadd.s32 %v1593, %v1072
      %v1595 = vadd.s32 %v1593, %v1073
      %v1596 = vadd.s32 %v1593, %v1074
      %v1597 = vadd.s32 %v1593, %v1075
      %vm1598 = vcmp.ge.s32.totalorder %v1594, 0
      %vm1599 = vcmp.ge.s32.totalorder %v1595, 0
      %vm1600 = vcmp.ge.s32.totalorder %v1596, 0
      %vm1601 = vcmp.ge.s32.totalorder %v1597, 0
      %vm1602 = vcmp.lt.s32.totalorder %v1594, 16
      %vm1603 = vcmp.lt.s32.totalorder %v1595, 16
      %vm1604 = vcmp.lt.s32.totalorder %v1596, 16
      %vm1605 = vcmp.lt.s32.totalorder %v1597, 16
      %vm1606 = vmand %vm1598, %vm1602
      %vm1607 = vmand %vm1599, %vm1603
      %vm1608 = vmand %vm1600, %vm1604
      %vm1609 = vmand %vm1601, %vm1605
      %v1610 = vsel %vm1606, 1, 0
      %v1611 = vsel %vm1607, 1, 0
      %v1612 = vsel %vm1608, 1, 0
      %v1613 = vsel %vm1609, 1, 0
      %vm1614 = vcmp.eq.s32.totalorder %v1610, 1
      %vm1615 = vcmp.eq.s32.totalorder %v1611, 1
      %vm1616 = vcmp.eq.s32.totalorder %v1612, 1
      %vm1617 = vcmp.eq.s32.totalorder %v1613, 1
      %v1618 = vsel %vm1614, %v1588, 0.0
      %v1619 = vsel %vm1615, %v1589, 0.0
      %v1620 = vsel %vm1616, %v1590, 0.0
      %v1621 = vsel %vm1617, %v1591, 0.0
      %v1622 = vpack.c.bf16 %v1618, %v1618
      %v1623 = vpack.c.bf16 %v1619, %v1619
      %v1624 = vpack.c.bf16 %v1620, %v1620
      %v1625 = vpack.c.bf16 %v1621, %v1621
      %v1629 = vunpack.c.l.b16 %v1622
      %v1630 = vunpack.c.l.b16 %v1623
      %v1631 = vunpack.c.l.b16 %v1624
      %v1632 = vpack.c.b16 %v1630, %v1629
      %v1633 = vpack.c.b16 %v1631, %v1631
      %v1637 = vunpack.c.l.b16 %v1625
      %v1638 = vpack.c.b16 %v1637, %v1631
      %v1640 = vshrl.u32 %v1632, 16
      %v1642 = vshll.u32 %v1632, 16
      %v1644 = vrot.slane %v1642, 1
      %v1645 = vor.u32 %v1640, %v1644
      %v1647 = vshll.u32 %v1638, 16
      %v1649 = vrot.slane %v1647, 1
      %v1650 = vsel %vm580, %v1645, %v1649
      %v1651 = vshrl.u32 %v1638, 16
      %v1653 = vor.u32 %v1651, %v1649
      %v1656 = vrot.slane %v1632, 1
      %v1657 = vrot.slane %v1638, 1
      %v1658 = vsel %vm603, %v1656, %v1657
      %v1661 = vrot.slane %v1640, 1
      %v1662 = vrot.slane %v1642, 2
      %v1663 = vor.u32 %v1661, %v1662
      %v1664 = vrot.slane %v1651, 1
      %v1665 = vrot.slane %v1647, 2
      %v1666 = vor.u32 %v1664, %v1665
      %v1667 = vsel %vm611, %v1663, %v1666
      %v1670 = vrot.slane %v1632, 2
      %v1671 = vrot.slane %v1638, 2
      %v1672 = vsel %vm627, %v1670, %v1671
      %v1675 = vld [vmem:[%s7] sm:$0xf]
      %v1676 = vld [vmem:[%s7 + $0x4] sm:$0xf]
      %v1677 = vld [vmem:[%s7 + $0x8] sm:$0xf]
      %v1678 = vld [vmem:[%s7 + $0xc] sm:$0xf]
      %v1679 = vld [vmem:[%s7 + $0x10] sm:$0xf]
      %v1680 = vld [vmem:[%s7 + $0x14] sm:$0xf]
      %v1681 = vld [vmem:[%s7 + $0x18] sm:$0xf]
      %v1682 = vld [vmem:[%s7 + $0x1c] sm:$0xf]
      %v1683 = vld [vmem:[%s7 + $0x20] sm:$0xf]
      %v1684 = vld [vmem:[%s7 + $0x24] sm:$0xf]
      %v1685 = vld [vmem:[%s7 + $0x28] sm:$0xf]
      %v1686 = vld [vmem:[%s7 + $0x2c] sm:$0xf]
      %v1687 = vld [vmem:[%s7 + $0x30] sm:$0xf]
      %v1688 = vld [vmem:[%s7 + $0x34] sm:$0xf]
      %v1689 = vld [vmem:[%s7 + $0x38] sm:$0xf]
      %v1690 = vld [vmem:[%s7 + $0x3c] sm:$0xf]
      %v1691 = vld [vmem:[%s7 + $0x40] sm:$0xf]
      %v1692 = vld [vmem:[%s7 + $0x44] sm:$0xf]
      %v1693 = vld [vmem:[%s7 + $0x48] sm:$0xf]
      %v1694 = vld [vmem:[%s7 + $0x4c] sm:$0xf]
      %v1695 = vld [vmem:[%s7 + $0x50] sm:$0xf]
      %v1696 = vld [vmem:[%s7 + $0x54] sm:$0xf]
      %v1697 = vld [vmem:[%s7 + $0x58] sm:$0xf]
      %v1698 = vld [vmem:[%s7 + $0x5c] sm:$0xf]
      %v1699 = vld [vmem:[%s7 + $0x60] sm:$0xf]
      %v1700 = vld [vmem:[%s7 + $0x64] sm:$0xf]
      %v1701 = vld [vmem:[%s7 + $0x68] sm:$0xf]
      %v1702 = vld [vmem:[%s7 + $0x6c] sm:$0xf]
      %v1703 = vld [vmem:[%s7 + $0x70] sm:$0xf]
      %v1704 = vld [vmem:[%s7 + $0x74] sm:$0xf]
      %v1705 = vld [vmem:[%s7 + $0x78] sm:$0xf]
      %v1706 = vld [vmem:[%s7 + $0x7c] sm:$0xf]
      %v1707 = vld [vmem:[%s7 + $0x80] sm:$0xf]
      %v1708 = vld [vmem:[%s7 + $0x84] sm:$0xf]
      %v1709 = vld [vmem:[%s7 + $0x88] sm:$0xf]
      %v1710 = vld [vmem:[%s7 + $0x8c] sm:$0xf]
      %v1711 = vld [vmem:[%s7 + $0x90] sm:$0xf]
      %v1712 = vld [vmem:[%s7 + $0x94] sm:$0xf]
      %v1713 = vld [vmem:[%s7 + $0x98] sm:$0xf]
      %v1714 = vld [vmem:[%s7 + $0x9c] sm:$0xf]
      %v1715 = vld [vmem:[%s7 + $0xa0] sm:$0xf]
      %v1716 = vld [vmem:[%s7 + $0xa4] sm:$0xf]
      %v1717 = vld [vmem:[%s7 + $0xa8] sm:$0xf]
      %v1718 = vld [vmem:[%s7 + $0xac] sm:$0xf]
      %v1719 = vld [vmem:[%s7 + $0xb0] sm:$0xf]
      %v1720 = vld [vmem:[%s7 + $0xb4] sm:$0xf]
      %v1721 = vld [vmem:[%s7 + $0xb8] sm:$0xf]
      %v1722 = vld [vmem:[%s7 + $0xbc] sm:$0xf]
      %v1723 = vld [vmem:[%s7 + $0xc0] sm:$0xf]
      %v1724 = vld [vmem:[%s7 + $0xc4] sm:$0xf]
      %v1725 = vld [vmem:[%s7 + $0xc8] sm:$0xf]
      %v1726 = vld [vmem:[%s7 + $0xcc] sm:$0xf]
      %v1727 = vld [vmem:[%s7 + $0xd0] sm:$0xf]
      %v1728 = vld [vmem:[%s7 + $0xd4] sm:$0xf]
      %v1729 = vld [vmem:[%s7 + $0xd8] sm:$0xf]
      %v1730 = vld [vmem:[%s7 + $0xdc] sm:$0xf]
      %v1731 = vld [vmem:[%s7 + $0xe0] sm:$0xf]
      %v1732 = vld [vmem:[%s7 + $0xe4] sm:$0xf]
      %v1733 = vld [vmem:[%s7 + $0xe8] sm:$0xf]
      %v1734 = vld [vmem:[%s7 + $0xec] sm:$0xf]
      %v1735 = vld [vmem:[%s7 + $0xf0] sm:$0xf]
      %v1736 = vld [vmem:[%s7 + $0xf4] sm:$0xf]
      %v1737 = vld [vmem:[%s7 + $0xf8] sm:$0xf]
      %v1738 = vld [vmem:[%s7 + $0xfc] sm:$0xf]
      %v1739 = vld [vmem:[%s7 + $0x100] sm:$0xf]
      %v1740 = vld [vmem:[%s7 + $0x104] sm:$0xf]
      %v1741 = vld [vmem:[%s7 + $0x108] sm:$0xf]
      %v1742 = vld [vmem:[%s7 + $0x10c] sm:$0xf]
      %v1743 = vld [vmem:[%s7 + $0x110] sm:$0xf]
      %v1744 = vld [vmem:[%s7 + $0x114] sm:$0xf]
      %v1745 = vld [vmem:[%s7 + $0x118] sm:$0xf]
      %v1746 = vld [vmem:[%s7 + $0x11c] sm:$0xf]
      %v1747 = vld [vmem:[%s7 + $0x120] sm:$0xf]
      %v1748 = vld [vmem:[%s7 + $0x124] sm:$0xf]
      %v1749 = vld [vmem:[%s7 + $0x128] sm:$0xf]
      %v1750 = vld [vmem:[%s7 + $0x12c] sm:$0xf]
      %v1751 = vld [vmem:[%s7 + $0x130] sm:$0xf]
      %v1752 = vld [vmem:[%s7 + $0x134] sm:$0xf]
      %v1753 = vld [vmem:[%s7 + $0x138] sm:$0xf]
      %v1754 = vld [vmem:[%s7 + $0x13c] sm:$0xf]
      %v1835 = vunpack.c.l.b16 %v1675
      %v1836 = vunpack.c.l.b16 %v1676
      %v1837 = vunpack.c.l.b16 %v1677
      %v1838 = vunpack.c.l.b16 %v1678
      %v1839 = vunpack.c.l.b16 %v1679
      %v1840 = vunpack.c.l.b16 %v1680
      %v1841 = vunpack.c.l.b16 %v1681
      %v1842 = vunpack.c.l.b16 %v1682
      %v1843 = vunpack.c.l.b16 %v1683
      %v1844 = vunpack.c.l.b16 %v1684
      %v1845 = vunpack.c.l.b16 %v1685
      %v1846 = vunpack.c.l.b16 %v1686
      %v1847 = vunpack.c.l.b16 %v1687
      %v1848 = vunpack.c.l.b16 %v1688
      %v1849 = vunpack.c.l.b16 %v1689
      %v1850 = vunpack.c.l.b16 %v1690
      %v1851 = vunpack.c.l.b16 %v1691
      %v1852 = vunpack.c.l.b16 %v1692
      %v1853 = vunpack.c.l.b16 %v1693
      %v1854 = vunpack.c.l.b16 %v1694
      %v1855 = vunpack.c.l.b16 %v1695
      %v1856 = vunpack.c.l.b16 %v1696
      %v1857 = vunpack.c.l.b16 %v1697
      %v1858 = vunpack.c.l.b16 %v1698
      %v1859 = vunpack.c.l.b16 %v1699
      %v1860 = vunpack.c.l.b16 %v1700
      %v1861 = vunpack.c.l.b16 %v1701
      %v1862 = vunpack.c.l.b16 %v1702
      %v1863 = vunpack.c.l.b16 %v1703
      %v1864 = vunpack.c.l.b16 %v1704
      %v1865 = vunpack.c.l.b16 %v1705
      %v1866 = vunpack.c.l.b16 %v1706
      %v1867 = vunpack.c.l.b16 %v1707
      %v1868 = vunpack.c.l.b16 %v1708
      %v1869 = vunpack.c.l.b16 %v1709
      %v1870 = vunpack.c.l.b16 %v1710
      %v1871 = vunpack.c.l.b16 %v1711
      %v1872 = vunpack.c.l.b16 %v1712
      %v1873 = vunpack.c.l.b16 %v1713
      %v1874 = vunpack.c.l.b16 %v1714
      %v1875 = vunpack.c.l.b16 %v1715
      %v1876 = vunpack.c.l.b16 %v1716
      %v1877 = vunpack.c.l.b16 %v1717
      %v1878 = vunpack.c.l.b16 %v1718
      %v1879 = vunpack.c.l.b16 %v1719
      %v1880 = vunpack.c.l.b16 %v1720
      %v1881 = vunpack.c.l.b16 %v1721
      %v1882 = vunpack.c.l.b16 %v1722
      %v1883 = vunpack.c.l.b16 %v1723
      %v1884 = vunpack.c.l.b16 %v1724
      %v1885 = vunpack.c.l.b16 %v1725
      %v1886 = vunpack.c.l.b16 %v1726
      %v1887 = vunpack.c.l.b16 %v1727
      %v1888 = vunpack.c.l.b16 %v1728
      %v1889 = vunpack.c.l.b16 %v1729
      %v1890 = vunpack.c.l.b16 %v1730
      %v1891 = vunpack.c.l.b16 %v1731
      %v1892 = vunpack.c.l.b16 %v1732
      %v1893 = vunpack.c.l.b16 %v1733
      %v1894 = vunpack.c.l.b16 %v1734
      %v1895 = vunpack.c.l.b16 %v1735
      %v1896 = vunpack.c.l.b16 %v1736
      %v1897 = vunpack.c.l.b16 %v1737
      %v1898 = vunpack.c.l.b16 %v1738
      %v1899 = vunpack.c.l.b16 %v1739
      %v1900 = vunpack.c.l.b16 %v1740
      %v1901 = vunpack.c.l.b16 %v1741
      %v1902 = vunpack.c.l.b16 %v1742
      %v1903 = vunpack.c.l.b16 %v1743
      %v1904 = vunpack.c.l.b16 %v1744
      %v1905 = vunpack.c.l.b16 %v1745
      %v1906 = vunpack.c.l.b16 %v1746
      %v1907 = vunpack.c.l.b16 %v1747
      %v1908 = vunpack.c.l.b16 %v1748
      %v1909 = vunpack.c.l.b16 %v1749
      %v1910 = vunpack.c.l.b16 %v1750
      %v1911 = vunpack.c.l.b16 %v1751
      %v1912 = vunpack.c.l.b16 %v1752
      %v1913 = vunpack.c.l.b16 %v1753
      %v1914 = vunpack.c.l.b16 %v1754
      %v1915 = vpack.c.b16 %v1836, %v1835
      %v1916 = vpack.c.b16 %v1838, %v1837
      %v1917 = vpack.c.b16 %v1840, %v1839
      %v1918 = vpack.c.b16 %v1842, %v1841
      %v1919 = vpack.c.b16 %v1844, %v1843
      %v1920 = vpack.c.b16 %v1846, %v1845
      %v1921 = vpack.c.b16 %v1848, %v1847
      %v1922 = vpack.c.b16 %v1850, %v1849
      %v1923 = vpack.c.b16 %v1852, %v1851
      %v1924 = vpack.c.b16 %v1854, %v1853
      %v1925 = vpack.c.b16 %v1856, %v1855
      %v1926 = vpack.c.b16 %v1858, %v1857
      %v1927 = vpack.c.b16 %v1860, %v1859
      %v1928 = vpack.c.b16 %v1862, %v1861
      %v1929 = vpack.c.b16 %v1864, %v1863
      %v1930 = vpack.c.b16 %v1866, %v1865
      %v1931 = vpack.c.b16 %v1868, %v1867
      %v1932 = vpack.c.b16 %v1870, %v1869
      %v1933 = vpack.c.b16 %v1872, %v1871
      %v1934 = vpack.c.b16 %v1874, %v1873
      %v1935 = vpack.c.b16 %v1876, %v1875
      %v1936 = vpack.c.b16 %v1878, %v1877
      %v1937 = vpack.c.b16 %v1880, %v1879
      %v1938 = vpack.c.b16 %v1882, %v1881
      %v1939 = vpack.c.b16 %v1884, %v1883
      %v1940 = vpack.c.b16 %v1886, %v1885
      %v1941 = vpack.c.b16 %v1888, %v1887
      %v1942 = vpack.c.b16 %v1890, %v1889
      %v1943 = vpack.c.b16 %v1892, %v1891
      %v1944 = vpack.c.b16 %v1894, %v1893
      %v1945 = vpack.c.b16 %v1896, %v1895
      %v1946 = vpack.c.b16 %v1898, %v1897
      %v1947 = vpack.c.b16 %v1900, %v1899
      %v1948 = vpack.c.b16 %v1902, %v1901
      %v1949 = vpack.c.b16 %v1904, %v1903
      %v1950 = vpack.c.b16 %v1906, %v1905
      %v1951 = vpack.c.b16 %v1908, %v1907
      %v1952 = vpack.c.b16 %v1910, %v1909
      %v1953 = vpack.c.b16 %v1912, %v1911
      %v1954 = vpack.c.b16 %v1914, %v1913
      %1995 = vmatpush.bf16.msra.mxu0 %v1922
      %1996 = vmatpush.bf16.msra.mxu0 %v1921
      %1997 = vmatpush.bf16.msra.mxu0 %v1920
      %1998 = vmatpush.bf16.msra.mxu0 %v1919
      %1999 = vmatpush.bf16.msra.mxu0 %v1918
      %2000 = vmatpush.bf16.msra.mxu0 %v1917
      %2001 = vmatpush.bf16.msra.mxu0 %v1916
      %2002 = vmatpush.bf16.msra.mxu0 %v1915
      %2003 = vmatmul.bf16.gmra.mxu0 %v1632
      %v2004 = vpop.f32.mrf.mxu0
      %v2005 = vadd.f32 0.0, %v2004
      %v2006 = vpop.f32.mrf.mxu0
      %v2007 = vadd.f32 0.0, %v2006
      %2008 = vmatmul.bf16.gmra.mxu0 %v1633
      %v2009 = vpop.f32.mrf.mxu0
      %v2010 = vadd.f32 0.0, %v2009
      %v2011 = vpop.f32.mrf.mxu0
      %2012 = vdwg.mxu0
      %2013 = vmatpush.bf16.msra.mxu0 %v1930
      %2014 = vmatpush.bf16.msra.mxu0 %v1929
      %2015 = vmatpush.bf16.msra.mxu0 %v1928
      %2016 = vmatpush.bf16.msra.mxu0 %v1927
      %2017 = vmatpush.bf16.msra.mxu0 %v1926
      %2018 = vmatpush.bf16.msra.mxu0 %v1925
      %2019 = vmatpush.bf16.msra.mxu0 %v1924
      %2020 = vmatpush.bf16.msra.mxu0 %v1923
      %2021 = vmatmul.bf16.gmra.mxu0 %v1650
      %v2022 = vpop.f32.mrf.mxu0
      %v2023 = vadd.f32 %v2005, %v2022
      %v2024 = vpop.f32.mrf.mxu0
      %v2025 = vadd.f32 %v2007, %v2024
      %2026 = vmatmul.bf16.gmra.mxu0 %v1653
      %v2027 = vpop.f32.mrf.mxu0
      %v2028 = vadd.f32 %v2010, %v2027
      %v2029 = vpop.f32.mrf.mxu0
      %2030 = vdwg.mxu0
      %2031 = vmatpush.bf16.msra.mxu0 %v1938
      %2032 = vmatpush.bf16.msra.mxu0 %v1937
      %2033 = vmatpush.bf16.msra.mxu0 %v1936
      %2034 = vmatpush.bf16.msra.mxu0 %v1935
      %2035 = vmatpush.bf16.msra.mxu0 %v1934
      %2036 = vmatpush.bf16.msra.mxu0 %v1933
      %2037 = vmatpush.bf16.msra.mxu0 %v1932
      %2038 = vmatpush.bf16.msra.mxu0 %v1931
      %2039 = vmatmul.bf16.gmra.mxu0 %v1658
      %v2040 = vpop.f32.mrf.mxu0
      %v2041 = vadd.f32 %v2023, %v2040
      %v2042 = vpop.f32.mrf.mxu0
      %v2043 = vadd.f32 %v2025, %v2042
      %2044 = vmatmul.bf16.gmra.mxu0 %v1657
      %v2045 = vpop.f32.mrf.mxu0
      %v2046 = vadd.f32 %v2028, %v2045
      %v2047 = vpop.f32.mrf.mxu0
      %2048 = vdwg.mxu0
      %2049 = vmatpush.bf16.msra.mxu0 %v1946
      %2050 = vmatpush.bf16.msra.mxu0 %v1945
      %2051 = vmatpush.bf16.msra.mxu0 %v1944
      %2052 = vmatpush.bf16.msra.mxu0 %v1943
      %2053 = vmatpush.bf16.msra.mxu0 %v1942
      %2054 = vmatpush.bf16.msra.mxu0 %v1941
      %2055 = vmatpush.bf16.msra.mxu0 %v1940
      %2056 = vmatpush.bf16.msra.mxu0 %v1939
      %2057 = vmatmul.bf16.gmra.mxu0 %v1667
      %v2058 = vpop.f32.mrf.mxu0
      %v2059 = vadd.f32 %v2041, %v2058
      %v2060 = vpop.f32.mrf.mxu0
      %v2061 = vadd.f32 %v2043, %v2060
      %2062 = vmatmul.bf16.gmra.mxu0 %v1666
      %v2063 = vpop.f32.mrf.mxu0
      %v2064 = vadd.f32 %v2046, %v2063
      %v2065 = vpop.f32.mrf.mxu0
      %2066 = vdwg.mxu0
      %2067 = vmatpush.bf16.msra.mxu0 %v1954
      %2068 = vmatpush.bf16.msra.mxu0 %v1953
      %2069 = vmatpush.bf16.msra.mxu0 %v1952
      %2070 = vmatpush.bf16.msra.mxu0 %v1951
      %2071 = vmatpush.bf16.msra.mxu0 %v1950
      %2072 = vmatpush.bf16.msra.mxu0 %v1949
      %2073 = vmatpush.bf16.msra.mxu0 %v1948
      %2074 = vmatpush.bf16.msra.mxu0 %v1947
      %2075 = vmatmul.bf16.gmra.mxu0 %v1672
      %v2076 = vpop.f32.mrf.mxu0
      %v2077 = vadd.f32 %v2059, %v2076
      %v2078 = vpop.f32.mrf.mxu0
      %v2079 = vadd.f32 %v2061, %v2078
      %2080 = vmatmul.bf16.gmra.mxu0 %v1671
      %v2081 = vpop.f32.mrf.mxu0
      %v2082 = vadd.f32 %v2064, %v2081
      %v2083 = vpop.f32.mrf.mxu0
      %2084 = vdwg.mxu0
      %v2085 = vld [vmem:[%s8] sm:$0x1]
      %v2087 = vperm.slane %v2085, 0
      %v2089 = vmul.f32 %v2077, %v2087
      %v2090 = vmul.f32 %v2079, %v2087
      %v2091 = vmul.f32 %v2082, %v2087
      %v2092 = vld [vmem:[%s9] sm:$0x1]
      %v2094 = vperm.slane %v2092, 0
      %v2096 = vadd.f32 %v2089, %v2094
      %v2097 = vadd.f32 %v2090, %v2094
      %v2098 = vadd.f32 %v2091, %v2094
      %v2099 = vtanh.pop %v2096
      %v2100 = vtanh.pop %v2097
      %v2101 = vtanh.pop %v2098
      %s2102 = sadd.s32 %s559, 4294967292
      %v2103 = vstv %s2102
      %v2104 = vadd.s32 %v2103, %v1072
      %v2105 = vadd.s32 %v2103, %v1073
      %v2106 = vadd.s32 %v2103, %v1074
      %vm2107 = vcmp.ge.s32.totalorder %v2104, 0
      %vm2108 = vcmp.ge.s32.totalorder %v2105, 0
      %vm2109 = vcmp.ge.s32.totalorder %v2106, 0
      %vm2110 = vcmp.lt.s32.totalorder %v2104, 16
      %vm2111 = vcmp.lt.s32.totalorder %v2105, 16
      %vm2112 = vcmp.lt.s32.totalorder %v2106, 16
      %vm2113 = vmand %vm2107, %vm2110
      %vm2114 = vmand %vm2108, %vm2111
      %vm2115 = vmand %vm2109, %vm2112
      %v2116 = vsel %vm2113, 1, 0
      %v2117 = vsel %vm2114, 1, 0
      %v2118 = vsel %vm2115, 1, 0
      %vm2119 = vcmp.eq.s32.totalorder %v2116, 1
      %vm2120 = vcmp.eq.s32.totalorder %v2117, 1
      %vm2121 = vcmp.eq.s32.totalorder %v2118, 1
      %v2122 = vsel %vm2119, %v2099, 0.0
      %v2123 = vsel %vm2120, %v2100, 0.0
      %v2124 = vsel %vm2121, %v2101, 0.0
      %v2125 = vpack.c.bf16 %v2122, %v2122
      %v2126 = vpack.c.bf16 %v2123, %v2123
      %v2127 = vpack.c.bf16 %v2124, %v2124
      %v2131 = vunpack.c.l.b16 %v2125
      %v2132 = vunpack.c.l.b16 %v2126
      %v2133 = vunpack.c.l.b16 %v2127
      %v2134 = vpack.c.b16 %v2132, %v2131
      %v2135 = vpack.c.b16 %v2133, %v2133
      %v2139 = vshrl.u32 %v2134, 16
      %v2141 = vshll.u32 %v2134, 16
      %v2143 = vrot.slane %v2141, 1
      %v2144 = vor.u32 %v2139, %v2143
      %v2146 = vshll.u32 %v2135, 16
      %v2148 = vrot.slane %v2146, 1
      %v2149 = vsel %vm580, %v2144, %v2148
      %v2150 = vshrl.u32 %v2135, 16
      %v2152 = vor.u32 %v2150, %v2148
      %v2155 = vrot.slane %v2134, 1
      %v2156 = vrot.slane %v2135, 1
      %v2157 = vsel %vm603, %v2155, %v2156
      %v2160 = vrot.slane %v2139, 1
      %v2161 = vrot.slane %v2141, 2
      %v2162 = vor.u32 %v2160, %v2161
      %v2163 = vrot.slane %v2150, 1
      %v2164 = vrot.slane %v2146, 2
      %v2165 = vor.u32 %v2163, %v2164
      %v2166 = vsel %vm611, %v2162, %v2165
      %v2169 = vrot.slane %v2134, 2
      %v2170 = vrot.slane %v2135, 2
      %v2171 = vsel %vm627, %v2169, %v2170
      %v2174 = vld [vmem:[%s10] sm:$0xf]
      %v2175 = vld [vmem:[%s10 + $0x4] sm:$0xf]
      %v2176 = vld [vmem:[%s10 + $0x8] sm:$0xf]
      %v2177 = vld [vmem:[%s10 + $0xc] sm:$0xf]
      %v2178 = vld [vmem:[%s10 + $0x10] sm:$0xf]
      %v2179 = vld [vmem:[%s10 + $0x14] sm:$0xf]
      %v2180 = vld [vmem:[%s10 + $0x18] sm:$0xf]
      %v2181 = vld [vmem:[%s10 + $0x1c] sm:$0xf]
      %v2182 = vld [vmem:[%s10 + $0x20] sm:$0xf]
      %v2183 = vld [vmem:[%s10 + $0x24] sm:$0xf]
      %v2184 = vld [vmem:[%s10 + $0x28] sm:$0xf]
      %v2185 = vld [vmem:[%s10 + $0x2c] sm:$0xf]
      %v2186 = vld [vmem:[%s10 + $0x30] sm:$0xf]
      %v2187 = vld [vmem:[%s10 + $0x34] sm:$0xf]
      %v2188 = vld [vmem:[%s10 + $0x38] sm:$0xf]
      %v2189 = vld [vmem:[%s10 + $0x3c] sm:$0xf]
      %v2190 = vld [vmem:[%s10 + $0x40] sm:$0xf]
      %v2191 = vld [vmem:[%s10 + $0x44] sm:$0xf]
      %v2192 = vld [vmem:[%s10 + $0x48] sm:$0xf]
      %v2193 = vld [vmem:[%s10 + $0x4c] sm:$0xf]
      %v2194 = vld [vmem:[%s10 + $0x50] sm:$0xf]
      %v2195 = vld [vmem:[%s10 + $0x54] sm:$0xf]
      %v2196 = vld [vmem:[%s10 + $0x58] sm:$0xf]
      %v2197 = vld [vmem:[%s10 + $0x5c] sm:$0xf]
      %v2198 = vld [vmem:[%s10 + $0x60] sm:$0xf]
      %v2199 = vld [vmem:[%s10 + $0x64] sm:$0xf]
      %v2200 = vld [vmem:[%s10 + $0x68] sm:$0xf]
      %v2201 = vld [vmem:[%s10 + $0x6c] sm:$0xf]
      %v2202 = vld [vmem:[%s10 + $0x70] sm:$0xf]
      %v2203 = vld [vmem:[%s10 + $0x74] sm:$0xf]
      %v2204 = vld [vmem:[%s10 + $0x78] sm:$0xf]
      %v2205 = vld [vmem:[%s10 + $0x7c] sm:$0xf]
      %v2206 = vld [vmem:[%s10 + $0x80] sm:$0xf]
      %v2207 = vld [vmem:[%s10 + $0x84] sm:$0xf]
      %v2208 = vld [vmem:[%s10 + $0x88] sm:$0xf]
      %v2209 = vld [vmem:[%s10 + $0x8c] sm:$0xf]
      %v2210 = vld [vmem:[%s10 + $0x90] sm:$0xf]
      %v2211 = vld [vmem:[%s10 + $0x94] sm:$0xf]
      %v2212 = vld [vmem:[%s10 + $0x98] sm:$0xf]
      %v2213 = vld [vmem:[%s10 + $0x9c] sm:$0xf]
      %v2214 = vld [vmem:[%s10 + $0xa0] sm:$0xf]
      %v2215 = vld [vmem:[%s10 + $0xa4] sm:$0xf]
      %v2216 = vld [vmem:[%s10 + $0xa8] sm:$0xf]
      %v2217 = vld [vmem:[%s10 + $0xac] sm:$0xf]
      %v2218 = vld [vmem:[%s10 + $0xb0] sm:$0xf]
      %v2219 = vld [vmem:[%s10 + $0xb4] sm:$0xf]
      %v2220 = vld [vmem:[%s10 + $0xb8] sm:$0xf]
      %v2221 = vld [vmem:[%s10 + $0xbc] sm:$0xf]
      %v2222 = vld [vmem:[%s10 + $0xc0] sm:$0xf]
      %v2223 = vld [vmem:[%s10 + $0xc4] sm:$0xf]
      %v2224 = vld [vmem:[%s10 + $0xc8] sm:$0xf]
      %v2225 = vld [vmem:[%s10 + $0xcc] sm:$0xf]
      %v2226 = vld [vmem:[%s10 + $0xd0] sm:$0xf]
      %v2227 = vld [vmem:[%s10 + $0xd4] sm:$0xf]
      %v2228 = vld [vmem:[%s10 + $0xd8] sm:$0xf]
      %v2229 = vld [vmem:[%s10 + $0xdc] sm:$0xf]
      %v2230 = vld [vmem:[%s10 + $0xe0] sm:$0xf]
      %v2231 = vld [vmem:[%s10 + $0xe4] sm:$0xf]
      %v2232 = vld [vmem:[%s10 + $0xe8] sm:$0xf]
      %v2233 = vld [vmem:[%s10 + $0xec] sm:$0xf]
      %v2234 = vld [vmem:[%s10 + $0xf0] sm:$0xf]
      %v2235 = vld [vmem:[%s10 + $0xf4] sm:$0xf]
      %v2236 = vld [vmem:[%s10 + $0xf8] sm:$0xf]
      %v2237 = vld [vmem:[%s10 + $0xfc] sm:$0xf]
      %v2238 = vld [vmem:[%s10 + $0x100] sm:$0xf]
      %v2239 = vld [vmem:[%s10 + $0x104] sm:$0xf]
      %v2240 = vld [vmem:[%s10 + $0x108] sm:$0xf]
      %v2241 = vld [vmem:[%s10 + $0x10c] sm:$0xf]
      %v2242 = vld [vmem:[%s10 + $0x110] sm:$0xf]
      %v2243 = vld [vmem:[%s10 + $0x114] sm:$0xf]
      %v2244 = vld [vmem:[%s10 + $0x118] sm:$0xf]
      %v2245 = vld [vmem:[%s10 + $0x11c] sm:$0xf]
      %v2246 = vld [vmem:[%s10 + $0x120] sm:$0xf]
      %v2247 = vld [vmem:[%s10 + $0x124] sm:$0xf]
      %v2248 = vld [vmem:[%s10 + $0x128] sm:$0xf]
      %v2249 = vld [vmem:[%s10 + $0x12c] sm:$0xf]
      %v2250 = vld [vmem:[%s10 + $0x130] sm:$0xf]
      %v2251 = vld [vmem:[%s10 + $0x134] sm:$0xf]
      %v2252 = vld [vmem:[%s10 + $0x138] sm:$0xf]
      %v2253 = vld [vmem:[%s10 + $0x13c] sm:$0xf]
      %v2334 = vunpack.c.l.b16 %v2174
      %v2335 = vunpack.c.l.b16 %v2175
      %v2336 = vunpack.c.l.b16 %v2176
      %v2337 = vunpack.c.l.b16 %v2177
      %v2338 = vunpack.c.l.b16 %v2178
      %v2339 = vunpack.c.l.b16 %v2179
      %v2340 = vunpack.c.l.b16 %v2180
      %v2341 = vunpack.c.l.b16 %v2181
      %v2342 = vunpack.c.l.b16 %v2182
      %v2343 = vunpack.c.l.b16 %v2183
      %v2344 = vunpack.c.l.b16 %v2184
      %v2345 = vunpack.c.l.b16 %v2185
      %v2346 = vunpack.c.l.b16 %v2186
      %v2347 = vunpack.c.l.b16 %v2187
      %v2348 = vunpack.c.l.b16 %v2188
      %v2349 = vunpack.c.l.b16 %v2189
      %v2350 = vunpack.c.l.b16 %v2190
      %v2351 = vunpack.c.l.b16 %v2191
      %v2352 = vunpack.c.l.b16 %v2192
      %v2353 = vunpack.c.l.b16 %v2193
      %v2354 = vunpack.c.l.b16 %v2194
      %v2355 = vunpack.c.l.b16 %v2195
      %v2356 = vunpack.c.l.b16 %v2196
      %v2357 = vunpack.c.l.b16 %v2197
      %v2358 = vunpack.c.l.b16 %v2198
      %v2359 = vunpack.c.l.b16 %v2199
      %v2360 = vunpack.c.l.b16 %v2200
      %v2361 = vunpack.c.l.b16 %v2201
      %v2362 = vunpack.c.l.b16 %v2202
      %v2363 = vunpack.c.l.b16 %v2203
      %v2364 = vunpack.c.l.b16 %v2204
      %v2365 = vunpack.c.l.b16 %v2205
      %v2366 = vunpack.c.l.b16 %v2206
      %v2367 = vunpack.c.l.b16 %v2207
      %v2368 = vunpack.c.l.b16 %v2208
      %v2369 = vunpack.c.l.b16 %v2209
      %v2370 = vunpack.c.l.b16 %v2210
      %v2371 = vunpack.c.l.b16 %v2211
      %v2372 = vunpack.c.l.b16 %v2212
      %v2373 = vunpack.c.l.b16 %v2213
      %v2374 = vunpack.c.l.b16 %v2214
      %v2375 = vunpack.c.l.b16 %v2215
      %v2376 = vunpack.c.l.b16 %v2216
      %v2377 = vunpack.c.l.b16 %v2217
      %v2378 = vunpack.c.l.b16 %v2218
      %v2379 = vunpack.c.l.b16 %v2219
      %v2380 = vunpack.c.l.b16 %v2220
      %v2381 = vunpack.c.l.b16 %v2221
      %v2382 = vunpack.c.l.b16 %v2222
      %v2383 = vunpack.c.l.b16 %v2223
      %v2384 = vunpack.c.l.b16 %v2224
      %v2385 = vunpack.c.l.b16 %v2225
      %v2386 = vunpack.c.l.b16 %v2226
      %v2387 = vunpack.c.l.b16 %v2227
      %v2388 = vunpack.c.l.b16 %v2228
      %v2389 = vunpack.c.l.b16 %v2229
      %v2390 = vunpack.c.l.b16 %v2230
      %v2391 = vunpack.c.l.b16 %v2231
      %v2392 = vunpack.c.l.b16 %v2232
      %v2393 = vunpack.c.l.b16 %v2233
      %v2394 = vunpack.c.l.b16 %v2234
      %v2395 = vunpack.c.l.b16 %v2235
      %v2396 = vunpack.c.l.b16 %v2236
      %v2397 = vunpack.c.l.b16 %v2237
      %v2398 = vunpack.c.l.b16 %v2238
      %v2399 = vunpack.c.l.b16 %v2239
      %v2400 = vunpack.c.l.b16 %v2240
      %v2401 = vunpack.c.l.b16 %v2241
      %v2402 = vunpack.c.l.b16 %v2242
      %v2403 = vunpack.c.l.b16 %v2243
      %v2404 = vunpack.c.l.b16 %v2244
      %v2405 = vunpack.c.l.b16 %v2245
      %v2406 = vunpack.c.l.b16 %v2246
      %v2407 = vunpack.c.l.b16 %v2247
      %v2408 = vunpack.c.l.b16 %v2248
      %v2409 = vunpack.c.l.b16 %v2249
      %v2410 = vunpack.c.l.b16 %v2250
      %v2411 = vunpack.c.l.b16 %v2251
      %v2412 = vunpack.c.l.b16 %v2252
      %v2413 = vunpack.c.l.b16 %v2253
      %v2414 = vpack.c.b16 %v2335, %v2334
      %v2415 = vpack.c.b16 %v2337, %v2336
      %v2416 = vpack.c.b16 %v2339, %v2338
      %v2417 = vpack.c.b16 %v2341, %v2340
      %v2418 = vpack.c.b16 %v2343, %v2342
      %v2419 = vpack.c.b16 %v2345, %v2344
      %v2420 = vpack.c.b16 %v2347, %v2346
      %v2421 = vpack.c.b16 %v2349, %v2348
      %v2422 = vpack.c.b16 %v2351, %v2350
      %v2423 = vpack.c.b16 %v2353, %v2352
      %v2424 = vpack.c.b16 %v2355, %v2354
      %v2425 = vpack.c.b16 %v2357, %v2356
      %v2426 = vpack.c.b16 %v2359, %v2358
      %v2427 = vpack.c.b16 %v2361, %v2360
      %v2428 = vpack.c.b16 %v2363, %v2362
      %v2429 = vpack.c.b16 %v2365, %v2364
      %v2430 = vpack.c.b16 %v2367, %v2366
      %v2431 = vpack.c.b16 %v2369, %v2368
      %v2432 = vpack.c.b16 %v2371, %v2370
      %v2433 = vpack.c.b16 %v2373, %v2372
      %v2434 = vpack.c.b16 %v2375, %v2374
      %v2435 = vpack.c.b16 %v2377, %v2376
      %v2436 = vpack.c.b16 %v2379, %v2378
      %v2437 = vpack.c.b16 %v2381, %v2380
      %v2438 = vpack.c.b16 %v2383, %v2382
      %v2439 = vpack.c.b16 %v2385, %v2384
      %v2440 = vpack.c.b16 %v2387, %v2386
      %v2441 = vpack.c.b16 %v2389, %v2388
      %v2442 = vpack.c.b16 %v2391, %v2390
      %v2443 = vpack.c.b16 %v2393, %v2392
      %v2444 = vpack.c.b16 %v2395, %v2394
      %v2445 = vpack.c.b16 %v2397, %v2396
      %v2446 = vpack.c.b16 %v2399, %v2398
      %v2447 = vpack.c.b16 %v2401, %v2400
      %v2448 = vpack.c.b16 %v2403, %v2402
      %v2449 = vpack.c.b16 %v2405, %v2404
      %v2450 = vpack.c.b16 %v2407, %v2406
      %v2451 = vpack.c.b16 %v2409, %v2408
      %v2452 = vpack.c.b16 %v2411, %v2410
      %v2453 = vpack.c.b16 %v2413, %v2412
      %2494 = vmatpush.bf16.msra.mxu0 %v2421
      %2495 = vmatpush.bf16.msra.mxu0 %v2420
      %2496 = vmatpush.bf16.msra.mxu0 %v2419
      %2497 = vmatpush.bf16.msra.mxu0 %v2418
      %2498 = vmatpush.bf16.msra.mxu0 %v2417
      %2499 = vmatpush.bf16.msra.mxu0 %v2416
      %2500 = vmatpush.bf16.msra.mxu0 %v2415
      %2501 = vmatpush.bf16.msra.mxu0 %v2414
      %2502 = vmatmul.bf16.gmra.mxu0 %v2134
      %v2503 = vpop.f32.mrf.mxu0
      %v2504 = vadd.f32 0.0, %v2503
      %v2505 = vpop.f32.mrf.mxu0
      %v2506 = vadd.f32 0.0, %v2505
      %2507 = vmatmul.bf16.gmra.mxu0 %v2135
      %v2508 = vpop.f32.mrf.mxu0
      %v2509 = vadd.f32 0.0, %v2508
      %v2510 = vpop.f32.mrf.mxu0
      %2511 = vdwg.mxu0
      %2512 = vmatpush.bf16.msra.mxu0 %v2429
      %2513 = vmatpush.bf16.msra.mxu0 %v2428
      %2514 = vmatpush.bf16.msra.mxu0 %v2427
      %2515 = vmatpush.bf16.msra.mxu0 %v2426
      %2516 = vmatpush.bf16.msra.mxu0 %v2425
      %2517 = vmatpush.bf16.msra.mxu0 %v2424
      %2518 = vmatpush.bf16.msra.mxu0 %v2423
      %2519 = vmatpush.bf16.msra.mxu0 %v2422
      %2520 = vmatmul.bf16.gmra.mxu0 %v2149
      %v2521 = vpop.f32.mrf.mxu0
      %v2522 = vadd.f32 %v2504, %v2521
      %v2523 = vpop.f32.mrf.mxu0
      %v2524 = vadd.f32 %v2506, %v2523
      %2525 = vmatmul.bf16.gmra.mxu0 %v2152
      %v2526 = vpop.f32.mrf.mxu0
      %v2527 = vadd.f32 %v2509, %v2526
      %v2528 = vpop.f32.mrf.mxu0
      %2529 = vdwg.mxu0
      %2530 = vmatpush.bf16.msra.mxu0 %v2437
      %2531 = vmatpush.bf16.msra.mxu0 %v2436
      %2532 = vmatpush.bf16.msra.mxu0 %v2435
      %2533 = vmatpush.bf16.msra.mxu0 %v2434
      %2534 = vmatpush.bf16.msra.mxu0 %v2433
      %2535 = vmatpush.bf16.msra.mxu0 %v2432
      %2536 = vmatpush.bf16.msra.mxu0 %v2431
      %2537 = vmatpush.bf16.msra.mxu0 %v2430
      %2538 = vmatmul.bf16.gmra.mxu0 %v2157
      %v2539 = vpop.f32.mrf.mxu0
      %v2540 = vadd.f32 %v2522, %v2539
      %v2541 = vpop.f32.mrf.mxu0
      %v2542 = vadd.f32 %v2524, %v2541
      %2543 = vmatmul.bf16.gmra.mxu0 %v2156
      %v2544 = vpop.f32.mrf.mxu0
      %v2545 = vadd.f32 %v2527, %v2544
      %v2546 = vpop.f32.mrf.mxu0
      %2547 = vdwg.mxu0
      %2548 = vmatpush.bf16.msra.mxu0 %v2445
      %2549 = vmatpush.bf16.msra.mxu0 %v2444
      %2550 = vmatpush.bf16.msra.mxu0 %v2443
      %2551 = vmatpush.bf16.msra.mxu0 %v2442
      %2552 = vmatpush.bf16.msra.mxu0 %v2441
      %2553 = vmatpush.bf16.msra.mxu0 %v2440
      %2554 = vmatpush.bf16.msra.mxu0 %v2439
      %2555 = vmatpush.bf16.msra.mxu0 %v2438
      %2556 = vmatmul.bf16.gmra.mxu0 %v2166
      %v2557 = vpop.f32.mrf.mxu0
      %v2558 = vadd.f32 %v2540, %v2557
      %v2559 = vpop.f32.mrf.mxu0
      %v2560 = vadd.f32 %v2542, %v2559
      %2561 = vmatmul.bf16.gmra.mxu0 %v2165
      %v2562 = vpop.f32.mrf.mxu0
      %v2563 = vadd.f32 %v2545, %v2562
      %v2564 = vpop.f32.mrf.mxu0
      %2565 = vdwg.mxu0
      %2566 = vmatpush.bf16.msra.mxu0 %v2453
      %2567 = vmatpush.bf16.msra.mxu0 %v2452
      %2568 = vmatpush.bf16.msra.mxu0 %v2451
      %2569 = vmatpush.bf16.msra.mxu0 %v2450
      %2570 = vmatpush.bf16.msra.mxu0 %v2449
      %2571 = vmatpush.bf16.msra.mxu0 %v2448
      %2572 = vmatpush.bf16.msra.mxu0 %v2447
      %2573 = vmatpush.bf16.msra.mxu0 %v2446
      %2574 = vmatmul.bf16.gmra.mxu0 %v2171
      %v2575 = vpop.f32.mrf.mxu0
      %v2576 = vadd.f32 %v2558, %v2575
      %v2577 = vpop.f32.mrf.mxu0
      %v2578 = vadd.f32 %v2560, %v2577
      %2579 = vmatmul.bf16.gmra.mxu0 %v2170
      %v2580 = vpop.f32.mrf.mxu0
      %v2581 = vadd.f32 %v2563, %v2580
      %v2582 = vpop.f32.mrf.mxu0
      %2583 = vdwg.mxu0
      %v2584 = vld [vmem:[%s11] sm:$0x1]
      %v2586 = vperm.slane %v2584, 0
      %v2588 = vmul.f32 %v2576, %v2586
      %v2589 = vmul.f32 %v2578, %v2586
      %v2590 = vmul.f32 %v2581, %v2586
      %v2591 = vld [vmem:[%s12] sm:$0x1]
      %v2593 = vperm.slane %v2591, 0
      %v2595 = vadd.f32 %v2588, %v2593
      %v2596 = vadd.f32 %v2589, %v2593
      %v2597 = vadd.f32 %v2590, %v2593
      %v2598 = vtanh.pop %v2595
      %v2599 = vtanh.pop %v2596
      %v2600 = vtanh.pop %v2597
      %s2601 = sadd.s32 %s559, 4294967294
      %v2602 = vstv %s2601
      %v2603 = vadd.s32 %v2602, %v1072
      %v2604 = vadd.s32 %v2602, %v1073
      %v2605 = vadd.s32 %v2602, %v1074
      %vm2606 = vcmp.ge.s32.totalorder %v2603, 0
      %vm2607 = vcmp.ge.s32.totalorder %v2604, 0
      %vm2608 = vcmp.ge.s32.totalorder %v2605, 0
      %vm2609 = vcmp.lt.s32.totalorder %v2603, 16
      %vm2610 = vcmp.lt.s32.totalorder %v2604, 16
      %vm2611 = vcmp.lt.s32.totalorder %v2605, 16
      %vm2612 = vmand %vm2606, %vm2609
      %vm2613 = vmand %vm2607, %vm2610
      %vm2614 = vmand %vm2608, %vm2611
      %v2615 = vsel %vm2612, 1, 0
      %v2616 = vsel %vm2613, 1, 0
      %v2617 = vsel %vm2614, 1, 0
      %vm2618 = vcmp.eq.s32.totalorder %v2615, 1
      %vm2619 = vcmp.eq.s32.totalorder %v2616, 1
      %vm2620 = vcmp.eq.s32.totalorder %v2617, 1
      %v2621 = vsel %vm2618, %v2598, 0.0
      %v2622 = vsel %vm2619, %v2599, 0.0
      %v2623 = vsel %vm2620, %v2600, 0.0
      %v2624 = vpack.c.bf16 %v2621, %v2621
      %v2625 = vpack.c.bf16 %v2622, %v2622
      %v2626 = vpack.c.bf16 %v2623, %v2623
      %v2629 = vunpack.c.l.b16 %v2624
      %v2630 = vunpack.c.l.b16 %v2625
      %v2631 = vpack.c.b16 %v2630, %v2629
      %v2634 = vunpack.c.l.b16 %v2626
      %v2635 = vpack.c.b16 %v2634, %v2634
      %v2637 = vshrl.u32 %v2631, 16
      %v2639 = vshll.u32 %v2631, 16
      %v2641 = vrot.slane %v2639, 1
      %v2642 = vor.u32 %v2637, %v2641
      %v2644 = vshll.u32 %v2635, 16
      %v2646 = vrot.slane %v2644, 1
      %v2647 = vsel %vm580, %v2642, %v2646
      %v2649 = vrot.slane %v2631, 1
      %v2650 = vrot.slane %v2635, 1
      %v2651 = vsel %vm603, %v2649, %v2650
      %v2653 = vrot.slane %v2637, 1
      %v2654 = vrot.slane %v2639, 2
      %v2655 = vor.u32 %v2653, %v2654
      %v2656 = vshrl.u32 %v2635, 16
      %v2658 = vrot.slane %v2656, 1
      %v2659 = vrot.slane %v2644, 2
      %v2660 = vor.u32 %v2658, %v2659
      %v2661 = vsel %vm611, %v2655, %v2660
      %v2663 = vrot.slane %v2631, 2
      %v2664 = vrot.slane %v2635, 2
      %v2665 = vsel %vm627, %v2663, %v2664
      %v2667 = vld [vmem:[%s13] sm:$0xf]
      %v2668 = vld [vmem:[%s13 + $0x4] sm:$0xf]
      %v2669 = vld [vmem:[%s13 + $0x8] sm:$0xf]
      %v2670 = vld [vmem:[%s13 + $0xc] sm:$0xf]
      %v2671 = vld [vmem:[%s13 + $0x10] sm:$0xf]
      %v2672 = vld [vmem:[%s13 + $0x14] sm:$0xf]
      %v2673 = vld [vmem:[%s13 + $0x18] sm:$0xf]
      %v2674 = vld [vmem:[%s13 + $0x1c] sm:$0xf]
      %v2675 = vld [vmem:[%s13 + $0x20] sm:$0xf]
      %v2676 = vld [vmem:[%s13 + $0x24] sm:$0xf]
      %v2677 = vld [vmem:[%s13 + $0x28] sm:$0xf]
      %v2678 = vld [vmem:[%s13 + $0x2c] sm:$0xf]
      %v2679 = vld [vmem:[%s13 + $0x30] sm:$0xf]
      %v2680 = vld [vmem:[%s13 + $0x34] sm:$0xf]
      %v2681 = vld [vmem:[%s13 + $0x38] sm:$0xf]
      %v2682 = vld [vmem:[%s13 + $0x3c] sm:$0xf]
      %v2683 = vld [vmem:[%s13 + $0x40] sm:$0xf]
      %v2684 = vld [vmem:[%s13 + $0x44] sm:$0xf]
      %v2685 = vld [vmem:[%s13 + $0x48] sm:$0xf]
      %v2686 = vld [vmem:[%s13 + $0x4c] sm:$0xf]
      %v2687 = vld [vmem:[%s13 + $0x50] sm:$0xf]
      %v2688 = vld [vmem:[%s13 + $0x54] sm:$0xf]
      %v2689 = vld [vmem:[%s13 + $0x58] sm:$0xf]
      %v2690 = vld [vmem:[%s13 + $0x5c] sm:$0xf]
      %v2691 = vld [vmem:[%s13 + $0x60] sm:$0xf]
      %v2692 = vld [vmem:[%s13 + $0x64] sm:$0xf]
      %v2693 = vld [vmem:[%s13 + $0x68] sm:$0xf]
      %v2694 = vld [vmem:[%s13 + $0x6c] sm:$0xf]
      %v2695 = vld [vmem:[%s13 + $0x70] sm:$0xf]
      %v2696 = vld [vmem:[%s13 + $0x74] sm:$0xf]
      %v2697 = vld [vmem:[%s13 + $0x78] sm:$0xf]
      %v2698 = vld [vmem:[%s13 + $0x7c] sm:$0xf]
      %v2699 = vld [vmem:[%s13 + $0x80] sm:$0xf]
      %v2700 = vld [vmem:[%s13 + $0x84] sm:$0xf]
      %v2701 = vld [vmem:[%s13 + $0x88] sm:$0xf]
      %v2702 = vld [vmem:[%s13 + $0x8c] sm:$0xf]
      %v2703 = vld [vmem:[%s13 + $0x90] sm:$0xf]
      %v2704 = vld [vmem:[%s13 + $0x94] sm:$0xf]
      %v2705 = vld [vmem:[%s13 + $0x98] sm:$0xf]
      %v2706 = vld [vmem:[%s13 + $0x9c] sm:$0xf]
      %v2707 = vld [vmem:[%s13 + $0xa0] sm:$0xf]
      %v2708 = vld [vmem:[%s13 + $0xa4] sm:$0xf]
      %v2709 = vld [vmem:[%s13 + $0xa8] sm:$0xf]
      %v2710 = vld [vmem:[%s13 + $0xac] sm:$0xf]
      %v2711 = vld [vmem:[%s13 + $0xb0] sm:$0xf]
      %v2712 = vld [vmem:[%s13 + $0xb4] sm:$0xf]
      %v2713 = vld [vmem:[%s13 + $0xb8] sm:$0xf]
      %v2714 = vld [vmem:[%s13 + $0xbc] sm:$0xf]
      %v2715 = vld [vmem:[%s13 + $0xc0] sm:$0xf]
      %v2716 = vld [vmem:[%s13 + $0xc4] sm:$0xf]
      %v2717 = vld [vmem:[%s13 + $0xc8] sm:$0xf]
      %v2718 = vld [vmem:[%s13 + $0xcc] sm:$0xf]
      %v2719 = vld [vmem:[%s13 + $0xd0] sm:$0xf]
      %v2720 = vld [vmem:[%s13 + $0xd4] sm:$0xf]
      %v2721 = vld [vmem:[%s13 + $0xd8] sm:$0xf]
      %v2722 = vld [vmem:[%s13 + $0xdc] sm:$0xf]
      %v2723 = vld [vmem:[%s13 + $0xe0] sm:$0xf]
      %v2724 = vld [vmem:[%s13 + $0xe4] sm:$0xf]
      %v2725 = vld [vmem:[%s13 + $0xe8] sm:$0xf]
      %v2726 = vld [vmem:[%s13 + $0xec] sm:$0xf]
      %v2727 = vld [vmem:[%s13 + $0xf0] sm:$0xf]
      %v2728 = vld [vmem:[%s13 + $0xf4] sm:$0xf]
      %v2729 = vld [vmem:[%s13 + $0xf8] sm:$0xf]
      %v2730 = vld [vmem:[%s13 + $0xfc] sm:$0xf]
      %v2731 = vld [vmem:[%s13 + $0x100] sm:$0xf]
      %v2732 = vld [vmem:[%s13 + $0x104] sm:$0xf]
      %v2733 = vld [vmem:[%s13 + $0x108] sm:$0xf]
      %v2734 = vld [vmem:[%s13 + $0x10c] sm:$0xf]
      %v2735 = vld [vmem:[%s13 + $0x110] sm:$0xf]
      %v2736 = vld [vmem:[%s13 + $0x114] sm:$0xf]
      %v2737 = vld [vmem:[%s13 + $0x118] sm:$0xf]
      %v2738 = vld [vmem:[%s13 + $0x11c] sm:$0xf]
      %v2739 = vld [vmem:[%s13 + $0x120] sm:$0xf]
      %v2740 = vld [vmem:[%s13 + $0x124] sm:$0xf]
      %v2741 = vld [vmem:[%s13 + $0x128] sm:$0xf]
      %v2742 = vld [vmem:[%s13 + $0x12c] sm:$0xf]
      %v2743 = vld [vmem:[%s13 + $0x130] sm:$0xf]
      %v2744 = vld [vmem:[%s13 + $0x134] sm:$0xf]
      %v2745 = vld [vmem:[%s13 + $0x138] sm:$0xf]
      %v2746 = vld [vmem:[%s13 + $0x13c] sm:$0xf]
      %v2827 = vunpack.c.l.b16 %v2667
      %v2828 = vunpack.c.l.b16 %v2668
      %v2829 = vunpack.c.l.b16 %v2669
      %v2830 = vunpack.c.l.b16 %v2670
      %v2831 = vunpack.c.l.b16 %v2671
      %v2832 = vunpack.c.l.b16 %v2672
      %v2833 = vunpack.c.l.b16 %v2673
      %v2834 = vunpack.c.l.b16 %v2674
      %v2835 = vunpack.c.l.b16 %v2675
      %v2836 = vunpack.c.l.b16 %v2676
      %v2837 = vunpack.c.l.b16 %v2677
      %v2838 = vunpack.c.l.b16 %v2678
      %v2839 = vunpack.c.l.b16 %v2679
      %v2840 = vunpack.c.l.b16 %v2680
      %v2841 = vunpack.c.l.b16 %v2681
      %v2842 = vunpack.c.l.b16 %v2682
      %v2843 = vunpack.c.l.b16 %v2683
      %v2844 = vunpack.c.l.b16 %v2684
      %v2845 = vunpack.c.l.b16 %v2685
      %v2846 = vunpack.c.l.b16 %v2686
      %v2847 = vunpack.c.l.b16 %v2687
      %v2848 = vunpack.c.l.b16 %v2688
      %v2849 = vunpack.c.l.b16 %v2689
      %v2850 = vunpack.c.l.b16 %v2690
      %v2851 = vunpack.c.l.b16 %v2691
      %v2852 = vunpack.c.l.b16 %v2692
      %v2853 = vunpack.c.l.b16 %v2693
      %v2854 = vunpack.c.l.b16 %v2694
      %v2855 = vunpack.c.l.b16 %v2695
      %v2856 = vunpack.c.l.b16 %v2696
      %v2857 = vunpack.c.l.b16 %v2697
      %v2858 = vunpack.c.l.b16 %v2698
      %v2859 = vunpack.c.l.b16 %v2699
      %v2860 = vunpack.c.l.b16 %v2700
      %v2861 = vunpack.c.l.b16 %v2701
      %v2862 = vunpack.c.l.b16 %v2702
      %v2863 = vunpack.c.l.b16 %v2703
      %v2864 = vunpack.c.l.b16 %v2704
      %v2865 = vunpack.c.l.b16 %v2705
      %v2866 = vunpack.c.l.b16 %v2706
      %v2867 = vunpack.c.l.b16 %v2707
      %v2868 = vunpack.c.l.b16 %v2708
      %v2869 = vunpack.c.l.b16 %v2709
      %v2870 = vunpack.c.l.b16 %v2710
      %v2871 = vunpack.c.l.b16 %v2711
      %v2872 = vunpack.c.l.b16 %v2712
      %v2873 = vunpack.c.l.b16 %v2713
      %v2874 = vunpack.c.l.b16 %v2714
      %v2875 = vunpack.c.l.b16 %v2715
      %v2876 = vunpack.c.l.b16 %v2716
      %v2877 = vunpack.c.l.b16 %v2717
      %v2878 = vunpack.c.l.b16 %v2718
      %v2879 = vunpack.c.l.b16 %v2719
      %v2880 = vunpack.c.l.b16 %v2720
      %v2881 = vunpack.c.l.b16 %v2721
      %v2882 = vunpack.c.l.b16 %v2722
      %v2883 = vunpack.c.l.b16 %v2723
      %v2884 = vunpack.c.l.b16 %v2724
      %v2885 = vunpack.c.l.b16 %v2725
      %v2886 = vunpack.c.l.b16 %v2726
      %v2887 = vunpack.c.l.b16 %v2727
      %v2888 = vunpack.c.l.b16 %v2728
      %v2889 = vunpack.c.l.b16 %v2729
      %v2890 = vunpack.c.l.b16 %v2730
      %v2891 = vunpack.c.l.b16 %v2731
      %v2892 = vunpack.c.l.b16 %v2732
      %v2893 = vunpack.c.l.b16 %v2733
      %v2894 = vunpack.c.l.b16 %v2734
      %v2895 = vunpack.c.l.b16 %v2735
      %v2896 = vunpack.c.l.b16 %v2736
      %v2897 = vunpack.c.l.b16 %v2737
      %v2898 = vunpack.c.l.b16 %v2738
      %v2899 = vunpack.c.l.b16 %v2739
      %v2900 = vunpack.c.l.b16 %v2740
      %v2901 = vunpack.c.l.b16 %v2741
      %v2902 = vunpack.c.l.b16 %v2742
      %v2903 = vunpack.c.l.b16 %v2743
      %v2904 = vunpack.c.l.b16 %v2744
      %v2905 = vunpack.c.l.b16 %v2745
      %v2906 = vunpack.c.l.b16 %v2746
      %v2907 = vpack.c.b16 %v2828, %v2827
      %v2908 = vpack.c.b16 %v2830, %v2829
      %v2909 = vpack.c.b16 %v2832, %v2831
      %v2910 = vpack.c.b16 %v2834, %v2833
      %v2911 = vpack.c.b16 %v2836, %v2835
      %v2912 = vpack.c.b16 %v2838, %v2837
      %v2913 = vpack.c.b16 %v2840, %v2839
      %v2914 = vpack.c.b16 %v2842, %v2841
      %v2915 = vpack.c.b16 %v2844, %v2843
      %v2916 = vpack.c.b16 %v2846, %v2845
      %v2917 = vpack.c.b16 %v2848, %v2847
      %v2918 = vpack.c.b16 %v2850, %v2849
      %v2919 = vpack.c.b16 %v2852, %v2851
      %v2920 = vpack.c.b16 %v2854, %v2853
      %v2921 = vpack.c.b16 %v2856, %v2855
      %v2922 = vpack.c.b16 %v2858, %v2857
      %v2923 = vpack.c.b16 %v2860, %v2859
      %v2924 = vpack.c.b16 %v2862, %v2861
      %v2925 = vpack.c.b16 %v2864, %v2863
      %v2926 = vpack.c.b16 %v2866, %v2865
      %v2927 = vpack.c.b16 %v2868, %v2867
      %v2928 = vpack.c.b16 %v2870, %v2869
      %v2929 = vpack.c.b16 %v2872, %v2871
      %v2930 = vpack.c.b16 %v2874, %v2873
      %v2931 = vpack.c.b16 %v2876, %v2875
      %v2932 = vpack.c.b16 %v2878, %v2877
      %v2933 = vpack.c.b16 %v2880, %v2879
      %v2934 = vpack.c.b16 %v2882, %v2881
      %v2935 = vpack.c.b16 %v2884, %v2883
      %v2936 = vpack.c.b16 %v2886, %v2885
      %v2937 = vpack.c.b16 %v2888, %v2887
      %v2938 = vpack.c.b16 %v2890, %v2889
      %v2939 = vpack.c.b16 %v2892, %v2891
      %v2940 = vpack.c.b16 %v2894, %v2893
      %v2941 = vpack.c.b16 %v2896, %v2895
      %v2942 = vpack.c.b16 %v2898, %v2897
      %v2943 = vpack.c.b16 %v2900, %v2899
      %v2944 = vpack.c.b16 %v2902, %v2901
      %v2945 = vpack.c.b16 %v2904, %v2903
      %v2946 = vpack.c.b16 %v2906, %v2905
      %2987 = vmatpush.bf16.msra.mxu0 %v2914
      %2988 = vmatpush.bf16.msra.mxu0 %v2913
      %2989 = vmatpush.bf16.msra.mxu0 %v2912
      %2990 = vmatpush.bf16.msra.mxu0 %v2911
      %2991 = vmatpush.bf16.msra.mxu0 %v2910
      %2992 = vmatpush.bf16.msra.mxu0 %v2909
      %2993 = vmatpush.bf16.msra.mxu0 %v2908
      %2994 = vmatpush.bf16.msra.mxu0 %v2907
      %2995 = vmatmul.bf16.gmra.mxu0 %v2631
      %v2996 = vpop.f32.mrf.mxu0
      %v2997 = vadd.f32 0.0, %v2996
      %v2998 = vpop.f32.mrf.mxu0
      %v2999 = vadd.f32 0.0, %v2998
      %3000 = vdwg.mxu0
      %3001 = vmatpush.bf16.msra.mxu0 %v2922
      %3002 = vmatpush.bf16.msra.mxu0 %v2921
      %3003 = vmatpush.bf16.msra.mxu0 %v2920
      %3004 = vmatpush.bf16.msra.mxu0 %v2919
      %3005 = vmatpush.bf16.msra.mxu0 %v2918
      %3006 = vmatpush.bf16.msra.mxu0 %v2917
      %3007 = vmatpush.bf16.msra.mxu0 %v2916
      %3008 = vmatpush.bf16.msra.mxu0 %v2915
      %3009 = vmatmul.bf16.gmra.mxu0 %v2647
      %v3010 = vpop.f32.mrf.mxu0
      %v3011 = vadd.f32 %v2997, %v3010
      %v3012 = vpop.f32.mrf.mxu0
      %v3013 = vadd.f32 %v2999, %v3012
      %3014 = vdwg.mxu0
      %3015 = vmatpush.bf16.msra.mxu0 %v2930
      %3016 = vmatpush.bf16.msra.mxu0 %v2929
      %3017 = vmatpush.bf16.msra.mxu0 %v2928
      %3018 = vmatpush.bf16.msra.mxu0 %v2927
      %3019 = vmatpush.bf16.msra.mxu0 %v2926
      %3020 = vmatpush.bf16.msra.mxu0 %v2925
      %3021 = vmatpush.bf16.msra.mxu0 %v2924
      %3022 = vmatpush.bf16.msra.mxu0 %v2923
      %3023 = vmatmul.bf16.gmra.mxu0 %v2651
      %v3024 = vpop.f32.mrf.mxu0
      %v3025 = vadd.f32 %v3011, %v3024
      %v3026 = vpop.f32.mrf.mxu0
      %v3027 = vadd.f32 %v3013, %v3026
      %3028 = vdwg.mxu0
      %3029 = vmatpush.bf16.msra.mxu0 %v2938
      %3030 = vmatpush.bf16.msra.mxu0 %v2937
      %3031 = vmatpush.bf16.msra.mxu0 %v2936
      %3032 = vmatpush.bf16.msra.mxu0 %v2935
      %3033 = vmatpush.bf16.msra.mxu0 %v2934
      %3034 = vmatpush.bf16.msra.mxu0 %v2933
      %3035 = vmatpush.bf16.msra.mxu0 %v2932
      %3036 = vmatpush.bf16.msra.mxu0 %v2931
      %3037 = vmatmul.bf16.gmra.mxu0 %v2661
      %v3038 = vpop.f32.mrf.mxu0
      %v3039 = vadd.f32 %v3025, %v3038
      %v3040 = vpop.f32.mrf.mxu0
      %v3041 = vadd.f32 %v3027, %v3040
      %3042 = vdwg.mxu0
      %3043 = vmatpush.bf16.msra.mxu0 %v2946
      %3044 = vmatpush.bf16.msra.mxu0 %v2945
      %3045 = vmatpush.bf16.msra.mxu0 %v2944
      %3046 = vmatpush.bf16.msra.mxu0 %v2943
      %3047 = vmatpush.bf16.msra.mxu0 %v2942
      %3048 = vmatpush.bf16.msra.mxu0 %v2941
      %3049 = vmatpush.bf16.msra.mxu0 %v2940
      %3050 = vmatpush.bf16.msra.mxu0 %v2939
      %3051 = vmatmul.bf16.gmra.mxu0 %v2665
      %v3052 = vpop.f32.mrf.mxu0
      %v3053 = vadd.f32 %v3039, %v3052
      %v3054 = vpop.f32.mrf.mxu0
      %v3055 = vadd.f32 %v3041, %v3054
      %3056 = vdwg.mxu0
      %v3057 = vld [vmem:[%s14] sm:$0x1]
      %v3059 = vperm.slane %v3057, 0
      %v3061 = vmul.f32 %v3053, %v3059
      %v3062 = vmul.f32 %v3055, %v3059
      %v3063 = vld [vmem:[%s15] sm:$0x1]
      %v3065 = vperm.slane %v3063, 0
      %v3067 = vadd.f32 %v3061, %v3065
      %v3068 = vadd.f32 %v3062, %v3065
      %3069 = vst [vmem:[%s557] sm:$0xff] %v3067
      %3070 = vst [vmem:[%s557 + $0x8] sm:$0xff] %v3068
      %s3071 = smul.u32 2, %s32
      %p3072 = scmp.lt.s32.totalorder %s31, 1
      %s3073 = scalar_select %p3072, %s31, 1
      %p3074 = scmp.lt.s32.totalorder %s3071, 1
      %s3075 = scalar_select %p3074, %s3071, 1
      %s3076 = smul.addr %s3073, 2
      %s3077 = sadd.s32 %s3075, %s3076
      %s3078 = smul.addr %s3077, 8
      %s3079 = scalar_lea.vmem %s16, %s3078
      // Predicated region
      $region85: #{postnet_forward.1} parent=83 // pred_check
        %p3080 = pneg %p402
      $region86: #{postnet_forward.1} parent=83 // pred_check_branch
        %3082 = sbr.rel (%p3080) target = $region88
      $region87: #{postnet_forward.1} parent=83 // pred_region
        %s3083 = smul.u32 2, %s32
      $region88: #{postnet_forward.1} parent=83 // pred_fallthru
        _
    $region84: #{postnet_forward.1} parent=5 // pred_fallthru
      _
    %p3084 = scmp.le.s32.totalorder 2, %s22
    // Predicated region
    $region89: #{postnet_forward.1} parent=5 // pred_check
      %p3085 = pneg %p3084
    $region90: #{postnet_forward.1} parent=5 // pred_check_branch
      %3087 = sbr.rel (%p3085) target = $region92
    $region91: #{postnet_forward.1} parent=5 // pred_region
      %s3088 = ssub.s32 %s22, 2
      // Predicated region
      $region93: #{postnet_forward.1} parent=91 // pred_check
        %p3089 = pneg %p408
      $region94: #{postnet_forward.1} parent=91 // pred_check_branch
        %3091 = sbr.rel (%p3089) target = $region96
      $region95: #{postnet_forward.1} parent=91 // pred_region
        %s3092 = smul.u32 2, %s34
        %p3093 = scmp.lt.s32.totalorder %s33, 1
        %s3094 = scalar_select %p3093, %s33, 1
        %p3095 = scmp.lt.s32.totalorder %s3092, 1
        %s3096 = scalar_select %p3095, %s3092, 1
        %s3097 = smul.addr %s3094, 2
        %s3098 = sadd.s32 %s3096, %s3097
        %s3099 = smul.addr %s3098, 8
        %s3100 = scalar_lea.vmem %s16, %s3099
      $region96: #{postnet_forward.1} parent=91 // pred_fallthru
        _
    $region92: #{postnet_forward.1} parent=5 // pred_fallthru
      _
  $region6: #{postnet_forward.1} parent=0 // loop_footer
    %s26 = sadd.s32 1, %s22
  $region7: #{postnet_forward.1} parent=0 // loop_footer_branch
    %21 = sbr.rel target = $region3
  $region8: #{postnet_forward.1} parent=0 // loop_exit
    _

</llo_original>
